<compile_context>
chip_gen: v6e
topology: v6e:2x2x1
jax: 0.10.0
libtpu: 0.0.40
codegen_flags: <defaults>
</compile_context>

<pallas_src>
import functools
import math

import jax
import jax.numpy as jnp
from jax.experimental import pallas as pl
from jax.experimental.pallas import tpu as pltpu


def block_kernel(x_ref, g1_ref, b1_ref, wq_ref, wk_ref, wv_ref,
                 wp_ref, bp_ref, g2_ref, b2_ref,
                 w1_ref, bm1_ref, w2_ref, bm2_ref,
                 o_ref, *, num_heads, head_size, mlp_chunk):
    """One grid step processes a single batch element (full T x D tile in VMEM)."""
    f32 = jnp.float32
    bf16 = jnp.bfloat16
    eps = 1e-5

    x = x_ref[0]                                   # (T, D) f32
    T, D = x.shape
    H, hs = num_heads, head_size

    # ---- LayerNorm 1 (biased variance, eps=1e-5; f32 elementwise) ----
    mu = jnp.mean(x, axis=-1, keepdims=True)
    var = jnp.mean((x - mu) ** 2, axis=-1, keepdims=True)
    ln1 = (x - mu) * jax.lax.rsqrt(var + eps) * g1_ref[...] + b1_ref[...]

    # ---- Multi-head causal self-attention (heads batched on leading dim) ----
    ln1_h = jnp.broadcast_to(ln1.astype(bf16), (H, T, D))       # hoisted once
    scale = 1.0 / math.sqrt(hs)

    # per-head weights: wq/wk/wv_ref are (H, D, hs), wp_ref is (H, hs, D)  (bf16)
    q = jnp.einsum('htd,hdk->htk', ln1_h, wq_ref[...],
                   preferred_element_type=f32) * scale           # scale folded into q
    k = jnp.einsum('htd,hdk->htk', ln1_h, wk_ref[...], preferred_element_type=f32)
    v = jnp.einsum('htd,hdk->htk', ln1_h, wv_ref[...], preferred_element_type=f32)

    s = jnp.einsum('hqd,hkd->hqk', q.astype(bf16), k.astype(bf16),
                   preferred_element_type=f32)                   # (H, T, T)
    row = jax.lax.broadcasted_iota(jnp.int32, (T, T), 0)
    col = jax.lax.broadcasted_iota(jnp.int32, (T, T), 1)
    s = jnp.where((row >= col)[None, :, :], s, -1e30)            # finite mask value
    s = s - jnp.max(s, axis=-1, keepdims=True)
    p = jnp.exp(s)
    p = p * pl.reciprocal(jnp.sum(p, axis=-1, keepdims=True), approx=True)
    # dropout on attention weights is identity in eval mode

    heads = jnp.einsum('hqk,hkd->hqd', p.astype(bf16), v.astype(bf16),
                       preferred_element_type=f32)               # (H, T, hs)
    proj = jnp.einsum('htk,hkd->htd', heads.astype(bf16), wp_ref[...],
                      preferred_element_type=f32)                # (H, T, D)
    attn = jnp.sum(proj, axis=0) + bp_ref[...]                   # (T, D) f32

    res1 = x + attn                                              # residual 1

    # ---- LayerNorm 2 ----
    mu2 = jnp.mean(res1, axis=-1, keepdims=True)
    var2 = jnp.mean((res1 - mu2) ** 2, axis=-1, keepdims=True)
    ln2 = (res1 - mu2) * jax.lax.rsqrt(var2 + eps) * g2_ref[...] + b2_ref[...]
    ln2_b = ln2.astype(bf16)

    # ---- MLP: Linear(D, 4D) -> ReLU -> Linear(4D, D), hidden dim chunked ----
    H4 = w1_ref.shape[1]
    ck = min(mlp_chunk, H4)
    mlp = jnp.zeros((T, D), f32)
    for c0 in range(0, H4, ck):                                  # static chunk loop
        c1 = min(c0 + ck, H4)
        hmid = jnp.dot(ln2_b, w1_ref[:, c0:c1],
                       preferred_element_type=f32) + bm1_ref[:, c0:c1]
        hmid = jnp.maximum(hmid, 0.0)
        mlp = mlp + jnp.dot(hmid.astype(bf16), w2_ref[c0:c1, :],
                            preferred_element_type=f32)
    mlp = mlp + bm2_ref[...]

    o_ref[0] = (res1 + mlp).astype(o_ref.dtype)                  # residual 2


def prepare_params(params, *, num_heads, head_size):
    """Layout-only preprocessing (outside the kernel): split heads, cast to bf16."""
    g1, b1, wq, wk, wv, wp, bp, g2, b2, w1, bm1, w2, bm2 = params
    D = wq.shape[0]
    H, hs = num_heads, head_size

    def split_in(w):  # (D, H*hs) -> (H, D, hs), bf16
        return jnp.transpose(w.reshape(D, H, hs), (1, 0, 2)).astype(jnp.bfloat16)

    wq3, wk3, wv3 = split_in(wq), split_in(wk), split_in(wv)
    wp3 = wp.reshape(H, hs, D).astype(jnp.bfloat16)       # (H*hs, D) -> (H, hs, D)
    return [g1, b1, wq3, wk3, wv3, wp3, bp, g2, b2,
            w1.astype(jnp.bfloat16), bm1, w2.astype(jnp.bfloat16), bm2]


def transformer_block(x, kernel_params, *, num_heads, head_size, mlp_chunk=2048):
    B, T, D = x.shape
    kern = functools.partial(block_kernel, num_heads=num_heads,
                             head_size=head_size, mlp_chunk=mlp_chunk)

    def full_spec(p):
        nd = p.ndim
        return pl.BlockSpec(p.shape, lambda b, _nd=nd: (0,) * _nd)

    in_specs = ([pl.BlockSpec((1, T, D), lambda b: (b, 0, 0))]
                + [full_spec(p) for p in kernel_params])

    return pl.pallas_call(
        kern,
        out_shape=jax.ShapeDtypeStruct((B, T, D), jnp.float32),
        grid=(B,),
        in_specs=in_specs,
        out_specs=pl.BlockSpec((1, T, D), lambda b: (b, 0, 0)),
        compiler_params=pltpu.CompilerParams(
            dimension_semantics=("parallel",),
            vmem_limit_bytes=48 * 1024 * 1024),   # headroom under v7x's 64 MiB
    )(x, *kernel_params)


def init_params(key, d_model, num_heads, head_size):
    """Deterministic synthetic parameters in the PyTorch-equivalent f32 layout."""
    ks = jax.random.split(key, 8)
    s = 0.02
    Hhs = num_heads * head_size
    g1 = jnp.ones((1, d_model), jnp.float32)
    b1 = jnp.zeros((1, d_model), jnp.float32)
    wq = s * jax.random.normal(ks[0], (d_model, Hhs), jnp.float32)
    wk = s * jax.random.normal(ks[1], (d_model, Hhs), jnp.float32)
    wv = s * jax.random.normal(ks[2], (d_model, Hhs), jnp.float32)
    wp = s * jax.random.normal(ks[3], (Hhs, d_model), jnp.float32)
    bp = s * jax.random.normal(ks[4], (1, d_model), jnp.float32)
    g2 = jnp.ones((1, d_model), jnp.float32)
    b2 = jnp.zeros((1, d_model), jnp.float32)
    w1 = s * jax.random.normal(ks[5], (d_model, 4 * d_model), jnp.float32)
    bm1 = jnp.zeros((1, 4 * d_model), jnp.float32)
    w2 = s * jax.random.normal(ks[6], (4 * d_model, d_model), jnp.float32)
    bm2 = jnp.zeros((1, d_model), jnp.float32)
    return [g1, b1, wq, wk, wv, wp, bp, g2, b2, w1, bm1, w2, bm2]


def reference_block(x, params, *, num_heads, head_size):
    """Pure-JAX f32 reference mirroring the PyTorch forward (eval mode)."""
    (g1, b1, wq, wk, wv, wp, bp, g2, b2, w1, bm1, w2, bm2) = params
    eps = 1e-5

    def ln(z, g, b):
        mu = jnp.mean(z, axis=-1, keepdims=True)
        var = jnp.mean((z - mu) ** 2, axis=-1, keepdims=True)
        return (z - mu) / jnp.sqrt(var + eps) * g + b

    B, T, D = x.shape
    x1 = ln(x, g1, b1)
    q = x1 @ wq
    k = x1 @ wk
    v = x1 @ wv
    mask = jnp.tril(jnp.ones((T, T), bool))
    outs = []
    for h in range(num_heads):
        sl = slice(h * head_size, (h + 1) * head_size)
        wei = jnp.einsum("btd,bsd->bts", q[..., sl], k[..., sl]) / math.sqrt(head_size)
        wei = jnp.where(mask, wei, -jnp.inf)
        wei = jax.nn.softmax(wei, axis=-1)
        outs.append(jnp.einsum("bts,bsd->btd", wei, v[..., sl]))
    attn = jnp.concatenate(outs, axis=-1) @ wp + bp
    res1 = x + attn
    x2 = ln(res1, g2, b2)
    mlp = jnp.maximum(x2 @ w1 + bm1, 0.0) @ w2 + bm2
    return res1 + mlp


if __name__ == "__main__":
    # Toy shapes consistent with the module: h=4 heads, head_size=8, d_model=32,
    # block_size=16 (context window), sequence length T=8 <= block_size.
    B, T, D = 2, 8, 32
    num_heads, head_size = 4, 8

    key = jax.random.PRNGKey(0)
    kx, kp = jax.random.split(key)
    x = jax.random.normal(kx, (B, T, D), jnp.float32)
    params = init_params(kp, D, num_heads, head_size)
    kparams = prepare_params(params, num_heads=num_heads, head_size=head_size)

    out = transformer_block(x, kparams, num_heads=num_heads, head_size=head_size)
    out = jax.block_until_ready(out)

    ref = reference_block(x, params, num_heads=num_heads, head_size=head_size)
    assert out.shape == (B, T, D)
    # bf16 MXU operands (f32 accumulation) => looser tolerance vs the f32 reference.
    assert jnp.allclose(out, ref, atol=2e-2, rtol=2e-2), "mismatch vs reference"

    print("KERNEL_OK")
</pallas_src>

<mosaic_0001>
module attributes {stable_mosaic.version = 11 : i64} {
  func.func @block_kernel(%arg0: i32, %arg1: memref<1x8x32xf32, #tpu.memory_space<vmem>>, %arg2: memref<1x32xf32, #tpu.memory_space<vmem>>, %arg3: memref<1x32xf32, #tpu.memory_space<vmem>>, %arg4: memref<4x32x8xbf16, #tpu.memory_space<vmem>>, %arg5: memref<4x32x8xbf16, #tpu.memory_space<vmem>>, %arg6: memref<4x32x8xbf16, #tpu.memory_space<vmem>>, %arg7: memref<4x8x32xbf16, #tpu.memory_space<vmem>>, %arg8: memref<1x32xf32, #tpu.memory_space<vmem>>, %arg9: memref<1x32xf32, #tpu.memory_space<vmem>>, %arg10: memref<1x32xf32, #tpu.memory_space<vmem>>, %arg11: memref<32x128xbf16, #tpu.memory_space<vmem>>, %arg12: memref<1x128xf32, #tpu.memory_space<vmem>>, %arg13: memref<128x32xbf16, #tpu.memory_space<vmem>>, %arg14: memref<1x32xf32, #tpu.memory_space<vmem>>, %arg15: memref<1x8x32xf32, #tpu.memory_space<vmem>>) attributes {dimension_semantics = [#tpu.dimension_semantics<parallel>], iteration_bounds = array<i64: 2>, scalar_prefetch = 0 : i64, scratch_operands = 0 : i64, tpu.core_type = #tpu.core_type<tc>, window_params = [{transform_indices = @transform_0, window_bounds = array<i64: 1, 8, 32>}, {pipeline_mode = #tpu.pipeline_mode<synchronous>, transform_indices = @transform_1, window_bounds = array<i64: 1, 32>}, {pipeline_mode = #tpu.pipeline_mode<synchronous>, transform_indices = @transform_2, window_bounds = array<i64: 1, 32>}, {pipeline_mode = #tpu.pipeline_mode<synchronous>, transform_indices = @transform_3, window_bounds = array<i64: 4, 32, 8>}, {pipeline_mode = #tpu.pipeline_mode<synchronous>, transform_indices = @transform_4, window_bounds = array<i64: 4, 32, 8>}, {pipeline_mode = #tpu.pipeline_mode<synchronous>, transform_indices = @transform_5, window_bounds = array<i64: 4, 32, 8>}, {pipeline_mode = #tpu.pipeline_mode<synchronous>, transform_indices = @transform_6, window_bounds = array<i64: 4, 8, 32>}, {pipeline_mode = #tpu.pipeline_mode<synchronous>, transform_indices = @transform_7, window_bounds = array<i64: 1, 32>}, {pipeline_mode = #tpu.pipeline_mode<synchronous>, transform_indices = @transform_8, window_bounds = array<i64: 1, 32>}, {pipeline_mode = #tpu.pipeline_mode<synchronous>, transform_indices = @transform_9, window_bounds = array<i64: 1, 32>}, {pipeline_mode = #tpu.pipeline_mode<synchronous>, transform_indices = @transform_10, window_bounds = array<i64: 32, 128>}, {pipeline_mode = #tpu.pipeline_mode<synchronous>, transform_indices = @transform_11, window_bounds = array<i64: 1, 128>}, {pipeline_mode = #tpu.pipeline_mode<synchronous>, transform_indices = @transform_12, window_bounds = array<i64: 128, 32>}, {pipeline_mode = #tpu.pipeline_mode<synchronous>, transform_indices = @transform_13, window_bounds = array<i64: 1, 32>}, {transform_indices = @transform_14, window_bounds = array<i64: 1, 8, 32>}]} {
    %c0 = arith.constant 0 : index
    %c0_0 = arith.constant 0 : index
    %c0_1 = arith.constant 0 : index
    %0 = vector.load %arg1[%c0, %c0_0, %c0_1] : memref<1x8x32xf32, #tpu.memory_space<vmem>>, vector<1x8x32xf32>
    %1 = vector.shape_cast %0 : vector<1x8x32xf32> to vector<8x32xf32>
    %cst = arith.constant dense<0.000000e+00> : vector<8xf32>
    %2 = vector.multi_reduction <add>, %1, %cst [1] : vector<8x32xf32> to vector<8xf32>
    %3 = vector.shape_cast %2 : vector<8xf32> to vector<8x1xf32>
    %cst_2 = arith.constant 3.200000e+01 : f32
    %4 = vector.broadcast %cst_2 : f32 to vector<8x1xf32>
    %5 = arith.divf %3, %4 : vector<8x1xf32>
    %6 = vector.broadcast %5 : vector<8x1xf32> to vector<8x32xf32>
    %7 = arith.subf %1, %6 : vector<8x32xf32>
    %8 = arith.mulf %7, %7 : vector<8x32xf32>
    %cst_3 = arith.constant dense<0.000000e+00> : vector<8xf32>
    %9 = vector.multi_reduction <add>, %8, %cst_3 [1] : vector<8x32xf32> to vector<8xf32>
    %10 = vector.shape_cast %9 : vector<8xf32> to vector<8x1xf32>
    %cst_4 = arith.constant 3.200000e+01 : f32
    %11 = vector.broadcast %cst_4 : f32 to vector<8x1xf32>
    %12 = arith.divf %10, %11 : vector<8x1xf32>
    %13 = vector.broadcast %5 : vector<8x1xf32> to vector<8x32xf32>
    %14 = arith.subf %1, %13 : vector<8x32xf32>
    %cst_5 = arith.constant 9.99999974E-6 : f32
    %15 = vector.broadcast %cst_5 : f32 to vector<8x1xf32>
    %16 = arith.addf %12, %15 : vector<8x1xf32>
    %17 = math.rsqrt %16 : vector<8x1xf32>
    %18 = vector.broadcast %17 : vector<8x1xf32> to vector<8x32xf32>
    %19 = arith.mulf %14, %18 : vector<8x32xf32>
    %c0_6 = arith.constant 0 : index
    %c0_7 = arith.constant 0 : index
    %20 = vector.load %arg2[%c0_6, %c0_7] : memref<1x32xf32, #tpu.memory_space<vmem>>, vector<1x32xf32>
    %21 = vector.broadcast %20 : vector<1x32xf32> to vector<8x32xf32>
    %22 = arith.mulf %19, %21 : vector<8x32xf32>
    %c0_8 = arith.constant 0 : index
    %c0_9 = arith.constant 0 : index
    %23 = vector.load %arg3[%c0_8, %c0_9] : memref<1x32xf32, #tpu.memory_space<vmem>>, vector<1x32xf32>
    %24 = vector.broadcast %23 : vector<1x32xf32> to vector<8x32xf32>
    %25 = arith.addf %22, %24 : vector<8x32xf32>
    %26 = arith.truncf %25 : vector<8x32xf32> to vector<8x32xbf16>
    %27 = vector.shape_cast %26 : vector<8x32xbf16> to vector<1x8x32xbf16>
    %28 = vector.broadcast %27 : vector<1x8x32xbf16> to vector<4x8x32xbf16>
    %c0_10 = arith.constant 0 : index
    %c0_11 = arith.constant 0 : index
    %c0_12 = arith.constant 0 : index
    %29 = vector.load %arg4[%c0_10, %c0_11, %c0_12] : memref<4x32x8xbf16, #tpu.memory_space<vmem>>, vector<4x32x8xbf16>
    "tpu.trace_start"() <{level = 10 : i32, message = "htd,hdk->htk"}> : () -> ()
    %cst_13 = arith.constant dense<0.000000e+00> : vector<4x8x8xf32>
    %30 = tpu.matmul %28, %29, %cst_13 {dimension_numbers = #tpu.dot_dimension_numbers<[2], [1], [1], [2], [0, 0, 0, 1, 1, 2], [0], [0]>} : vector<4x8x32xbf16>, vector<4x32x8xbf16>, vector<4x8x8xf32> -> vector<4x8x8xf32>
    "tpu.trace_stop"() : () -> ()
    %cst_14 = arith.constant 0.353553385 : f32
    %31 = vector.broadcast %cst_14 : f32 to vector<4x8x8xf32>
    %32 = arith.mulf %30, %31 : vector<4x8x8xf32>
    %c0_15 = arith.constant 0 : index
    %c0_16 = arith.constant 0 : index
    %c0_17 = arith.constant 0 : index
    %33 = vector.load %arg5[%c0_15, %c0_16, %c0_17] : memref<4x32x8xbf16, #tpu.memory_space<vmem>>, vector<4x32x8xbf16>
    "tpu.trace_start"() <{level = 10 : i32, message = "htd,hdk->htk"}> : () -> ()
    %cst_18 = arith.constant dense<0.000000e+00> : vector<4x8x8xf32>
    %34 = tpu.matmul %28, %33, %cst_18 {dimension_numbers = #tpu.dot_dimension_numbers<[2], [1], [1], [2], [0, 0, 0, 1, 1, 2], [0], [0]>} : vector<4x8x32xbf16>, vector<4x32x8xbf16>, vector<4x8x8xf32> -> vector<4x8x8xf32>
    "tpu.trace_stop"() : () -> ()
    %c0_19 = arith.constant 0 : index
    %c0_20 = arith.constant 0 : index
    %c0_21 = arith.constant 0 : index
    %35 = vector.load %arg6[%c0_19, %c0_20, %c0_21] : memref<4x32x8xbf16, #tpu.memory_space<vmem>>, vector<4x32x8xbf16>
    "tpu.trace_start"() <{level = 10 : i32, message = "htd,hdk->htk"}> : () -> ()
    %cst_22 = arith.constant dense<0.000000e+00> : vector<4x8x8xf32>
    %36 = tpu.matmul %28, %35, %cst_22 {dimension_numbers = #tpu.dot_dimension_numbers<[2], [1], [1], [2], [0, 0, 0, 1, 1, 2], [0], [0]>} : vector<4x8x32xbf16>, vector<4x32x8xbf16>, vector<4x8x8xf32> -> vector<4x8x8xf32>
    "tpu.trace_stop"() : () -> ()
    %37 = arith.truncf %32 : vector<4x8x8xf32> to vector<4x8x8xbf16>
    %38 = arith.truncf %34 : vector<4x8x8xf32> to vector<4x8x8xbf16>
    "tpu.trace_start"() <{level = 10 : i32, message = "hqd,hkd->hqk"}> : () -> ()
    %cst_23 = arith.constant dense<0.000000e+00> : vector<4x8x8xf32>
    %39 = tpu.matmul %37, %38, %cst_23 {dimension_numbers = #tpu.dot_dimension_numbers<[2], [2], [1], [1], [0, 0, 0, 1, 1, 1], [0], [0]>} : vector<4x8x8xbf16>, vector<4x8x8xbf16>, vector<4x8x8xf32> -> vector<4x8x8xf32>
    "tpu.trace_stop"() : () -> ()
    %40 = tpu.iota {dimensions = array<i32: 0>} : vector<8x8xi32>
    %41 = tpu.iota {dimensions = array<i32: 1>} : vector<8x8xi32>
    %42 = arith.cmpi sge, %40, %41 : vector<8x8xi32>
    %43 = vector.shape_cast %42 : vector<8x8xi1> to vector<1x8x8xi1>
    %cst_24 = arith.constant -1.000000e+30 : f32
    %44 = vector.shape_cast %43 : vector<1x8x8xi1> to vector<1x8x8xi1>
    %45 = vector.broadcast %44 : vector<1x8x8xi1> to vector<4x8x8xi1>
    %46 = vector.broadcast %cst_24 : f32 to vector<4x8x8xf32>
    %47 = arith.select %45, %39, %46 : vector<4x8x8xi1>, vector<4x8x8xf32>
    %cst_25 = arith.constant dense<0xFF800000> : vector<4x8xf32>
    %48 = vector.multi_reduction <maximumf>, %47, %cst_25 [2] : vector<4x8x8xf32> to vector<4x8xf32>
    %49 = vector.shape_cast %48 : vector<4x8xf32> to vector<4x8x1xf32>
    %50 = vector.broadcast %49 : vector<4x8x1xf32> to vector<4x8x8xf32>
    %51 = arith.subf %47, %50 : vector<4x8x8xf32>
    %52 = math.exp %51 : vector<4x8x8xf32>
    %cst_26 = arith.constant dense<0.000000e+00> : vector<4x8xf32>
    %53 = vector.multi_reduction <add>, %52, %cst_26 [2] : vector<4x8x8xf32> to vector<4x8xf32>
    %54 = vector.shape_cast %53 : vector<4x8xf32> to vector<4x8x1xf32>
    %55 = tpu.reciprocal %54 {approx = true} : vector<4x8x1xf32> -> vector<4x8x1xf32>
    %56 = vector.broadcast %55 : vector<4x8x1xf32> to vector<4x8x8xf32>
    %57 = arith.mulf %52, %56 : vector<4x8x8xf32>
    %58 = arith.truncf %57 : vector<4x8x8xf32> to vector<4x8x8xbf16>
    %59 = arith.truncf %36 : vector<4x8x8xf32> to vector<4x8x8xbf16>
    "tpu.trace_start"() <{level = 10 : i32, message = "hqk,hkd->hqd"}> : () -> ()
    %cst_27 = arith.constant dense<0.000000e+00> : vector<4x8x8xf32>
    %60 = tpu.matmul %58, %59, %cst_27 {dimension_numbers = #tpu.dot_dimension_numbers<[2], [1], [1], [2], [0, 0, 0, 1, 1, 2], [0], [0]>} : vector<4x8x8xbf16>, vector<4x8x8xbf16>, vector<4x8x8xf32> -> vector<4x8x8xf32>
    "tpu.trace_stop"() : () -> ()
    %61 = arith.truncf %60 : vector<4x8x8xf32> to vector<4x8x8xbf16>
    %c0_28 = arith.constant 0 : index
    %c0_29 = arith.constant 0 : index
    %c0_30 = arith.constant 0 : index
    %62 = vector.load %arg7[%c0_28, %c0_29, %c0_30] : memref<4x8x32xbf16, #tpu.memory_space<vmem>>, vector<4x8x32xbf16>
    "tpu.trace_start"() <{level = 10 : i32, message = "htk,hkd->htd"}> : () -> ()
    %cst_31 = arith.constant dense<0.000000e+00> : vector<4x8x32xf32>
    %63 = tpu.matmul %61, %62, %cst_31 {dimension_numbers = #tpu.dot_dimension_numbers<[2], [1], [1], [2], [0, 0, 0, 1, 1, 2], [0], [0]>} : vector<4x8x8xbf16>, vector<4x8x32xbf16>, vector<4x8x32xf32> -> vector<4x8x32xf32>
    "tpu.trace_stop"() : () -> ()
    %cst_32 = arith.constant dense<0.000000e+00> : vector<8x32xf32>
    %64 = vector.multi_reduction <add>, %63, %cst_32 [0] : vector<4x8x32xf32> to vector<8x32xf32>
    %c0_33 = arith.constant 0 : index
    %c0_34 = arith.constant 0 : index
    %65 = vector.load %arg8[%c0_33, %c0_34] : memref<1x32xf32, #tpu.memory_space<vmem>>, vector<1x32xf32>
    %66 = vector.broadcast %65 : vector<1x32xf32> to vector<8x32xf32>
    %67 = arith.addf %64, %66 : vector<8x32xf32>
    %68 = arith.addf %1, %67 : vector<8x32xf32>
    %cst_35 = arith.constant dense<0.000000e+00> : vector<8xf32>
    %69 = vector.multi_reduction <add>, %68, %cst_35 [1] : vector<8x32xf32> to vector<8xf32>
    %70 = vector.shape_cast %69 : vector<8xf32> to vector<8x1xf32>
    %cst_36 = arith.constant 3.200000e+01 : f32
    %71 = vector.broadcast %cst_36 : f32 to vector<8x1xf32>
    %72 = arith.divf %70, %71 : vector<8x1xf32>
    %73 = vector.broadcast %72 : vector<8x1xf32> to vector<8x32xf32>
    %74 = arith.subf %68, %73 : vector<8x32xf32>
    %75 = arith.mulf %74, %74 : vector<8x32xf32>
    %cst_37 = arith.constant dense<0.000000e+00> : vector<8xf32>
    %76 = vector.multi_reduction <add>, %75, %cst_37 [1] : vector<8x32xf32> to vector<8xf32>
    %77 = vector.shape_cast %76 : vector<8xf32> to vector<8x1xf32>
    %cst_38 = arith.constant 3.200000e+01 : f32
    %78 = vector.broadcast %cst_38 : f32 to vector<8x1xf32>
    %79 = arith.divf %77, %78 : vector<8x1xf32>
    %80 = vector.broadcast %72 : vector<8x1xf32> to vector<8x32xf32>
    %81 = arith.subf %68, %80 : vector<8x32xf32>
    %cst_39 = arith.constant 9.99999974E-6 : f32
    %82 = vector.broadcast %cst_39 : f32 to vector<8x1xf32>
    %83 = arith.addf %79, %82 : vector<8x1xf32>
    %84 = math.rsqrt %83 : vector<8x1xf32>
    %85 = vector.broadcast %84 : vector<8x1xf32> to vector<8x32xf32>
    %86 = arith.mulf %81, %85 : vector<8x32xf32>
    %c0_40 = arith.constant 0 : index
    %c0_41 = arith.constant 0 : index
    %87 = vector.load %arg9[%c0_40, %c0_41] : memref<1x32xf32, #tpu.memory_space<vmem>>, vector<1x32xf32>
    %88 = vector.broadcast %87 : vector<1x32xf32> to vector<8x32xf32>
    %89 = arith.mulf %86, %88 : vector<8x32xf32>
    %c0_42 = arith.constant 0 : index
    %c0_43 = arith.constant 0 : index
    %90 = vector.load %arg10[%c0_42, %c0_43] : memref<1x32xf32, #tpu.memory_space<vmem>>, vector<1x32xf32>
    %91 = vector.broadcast %90 : vector<1x32xf32> to vector<8x32xf32>
    %92 = arith.addf %89, %91 : vector<8x32xf32>
    %93 = arith.truncf %92 : vector<8x32xf32> to vector<8x32xbf16>
    %cst_44 = arith.constant 0.000000e+00 : f32
    %94 = vector.broadcast %cst_44 : f32 to vector<8x32xf32>
    %c0_45 = arith.constant 0 : index
    %c0_46 = arith.constant 0 : index
    %95 = vector.load %arg11[%c0_45, %c0_46] : memref<32x128xbf16, #tpu.memory_space<vmem>>, vector<32x128xbf16>
    %cst_47 = arith.constant dense<0.000000e+00> : vector<8x128xf32>
    %96 = tpu.matmul %93, %95, %cst_47 {dimension_numbers = #tpu.dot_dimension_numbers<[1], [0], [0], [1], [0, 0, 1, 1], [], []>} : vector<8x32xbf16>, vector<32x128xbf16>, vector<8x128xf32> -> vector<8x128xf32>
    %c0_48 = arith.constant 0 : index
    %c0_49 = arith.constant 0 : index
    %97 = vector.load %arg12[%c0_48, %c0_49] : memref<1x128xf32, #tpu.memory_space<vmem>>, vector<1x128xf32>
    %98 = vector.broadcast %97 : vector<1x128xf32> to vector<8x128xf32>
    %99 = arith.addf %96, %98 : vector<8x128xf32>
    %cst_50 = arith.constant 0.000000e+00 : f32
    %100 = vector.broadcast %cst_50 : f32 to vector<8x128xf32>
    %101 = arith.maximumf %99, %100 : vector<8x128xf32>
    %102 = arith.truncf %101 : vector<8x128xf32> to vector<8x128xbf16>
    %c0_51 = arith.constant 0 : index
    %c0_52 = arith.constant 0 : index
    %103 = vector.load %arg13[%c0_51, %c0_52] : memref<128x32xbf16, #tpu.memory_space<vmem>>, vector<128x32xbf16>
    %cst_53 = arith.constant dense<0.000000e+00> : vector<8x32xf32>
    %104 = tpu.matmul %102, %103, %cst_53 {dimension_numbers = #tpu.dot_dimension_numbers<[1], [0], [0], [1], [0, 0, 1, 1], [], []>} : vector<8x128xbf16>, vector<128x32xbf16>, vector<8x32xf32> -> vector<8x32xf32>
    %105 = arith.addf %94, %104 : vector<8x32xf32>
    %c0_54 = arith.constant 0 : index
    %c0_55 = arith.constant 0 : index
    %106 = vector.load %arg14[%c0_54, %c0_55] : memref<1x32xf32, #tpu.memory_space<vmem>>, vector<1x32xf32>
    %107 = vector.broadcast %106 : vector<1x32xf32> to vector<8x32xf32>
    %108 = arith.addf %105, %107 : vector<8x32xf32>
    %109 = arith.addf %68, %108 : vector<8x32xf32>
    %c0_56 = arith.constant 0 : index
    %c0_57 = arith.constant 0 : index
    %c0_58 = arith.constant 0 : index
    %110 = vector.load %arg15[%c0_56, %c0_57, %c0_58] : memref<1x8x32xf32, #tpu.memory_space<vmem>>, vector<1x8x32xf32>
    %111 = vector.shape_cast %110 : vector<1x8x32xf32> to vector<8x32xf32>
    %112 = vector.shape_cast %109 : vector<8x32xf32> to vector<1x8x32xf32>
    tpu.vector_store %arg15[%c0_56, %c0_57, %c0_58], %112 {strides = array<i32>} : memref<1x8x32xf32, #tpu.memory_space<vmem>>, vector<1x8x32xf32>,
    return
  }
  func.func @transform_0(%arg0: i32) -> (i32, i32, i32) {
    %c0_i32 = arith.constant 0 : i32
    %c0_i32_0 = arith.constant 0 : i32
    %c0_i32_1 = arith.constant 0 : i32
    return %arg0, %c0_i32, %c0_i32_0 : i32, i32, i32
  }
  func.func @transform_1(%arg0: i32) -> (i32, i32) {
    %c0_i32 = arith.constant 0 : i32
    %c0_i32_0 = arith.constant 0 : i32
    %c0_i32_1 = arith.constant 0 : i32
    return %c0_i32, %c0_i32_0 : i32, i32
  }
  func.func @transform_2(%arg0: i32) -> (i32, i32) {
    %c0_i32 = arith.constant 0 : i32
    %c0_i32_0 = arith.constant 0 : i32
    %c0_i32_1 = arith.constant 0 : i32
    return %c0_i32, %c0_i32_0 : i32, i32
  }
  func.func @transform_3(%arg0: i32) -> (i32, i32, i32) {
    %c0_i32 = arith.constant 0 : i32
    %c0_i32_0 = arith.constant 0 : i32
    %c0_i32_1 = arith.constant 0 : i32
    %c0_i32_2 = arith.constant 0 : i32
    return %c0_i32, %c0_i32_0, %c0_i32_1 : i32, i32, i32
  }
  func.func @transform_4(%arg0: i32) -> (i32, i32, i32) {
    %c0_i32 = arith.constant 0 : i32
    %c0_i32_0 = arith.constant 0 : i32
    %c0_i32_1 = arith.constant 0 : i32
    %c0_i32_2 = arith.constant 0 : i32
    return %c0_i32, %c0_i32_0, %c0_i32_1 : i32, i32, i32
  }
  func.func @transform_5(%arg0: i32) -> (i32, i32, i32) {
    %c0_i32 = arith.constant 0 : i32
    %c0_i32_0 = arith.constant 0 : i32
    %c0_i32_1 = arith.constant 0 : i32
    %c0_i32_2 = arith.constant 0 : i32
    return %c0_i32, %c0_i32_0, %c0_i32_1 : i32, i32, i32
  }
  func.func @transform_6(%arg0: i32) -> (i32, i32, i32) {
    %c0_i32 = arith.constant 0 : i32
    %c0_i32_0 = arith.constant 0 : i32
    %c0_i32_1 = arith.constant 0 : i32
    %c0_i32_2 = arith.constant 0 : i32
    return %c0_i32, %c0_i32_0, %c0_i32_1 : i32, i32, i32
  }
  func.func @transform_7(%arg0: i32) -> (i32, i32) {
    %c0_i32 = arith.constant 0 : i32
    %c0_i32_0 = arith.constant 0 : i32
    %c0_i32_1 = arith.constant 0 : i32
    return %c0_i32, %c0_i32_0 : i32, i32
  }
  func.func @transform_8(%arg0: i32) -> (i32, i32) {
    %c0_i32 = arith.constant 0 : i32
    %c0_i32_0 = arith.constant 0 : i32
    %c0_i32_1 = arith.constant 0 : i32
    return %c0_i32, %c0_i32_0 : i32, i32
  }
  func.func @transform_9(%arg0: i32) -> (i32, i32) {
    %c0_i32 = arith.constant 0 : i32
    %c0_i32_0 = arith.constant 0 : i32
    %c0_i32_1 = arith.constant 0 : i32
    return %c0_i32, %c0_i32_0 : i32, i32
  }
  func.func @transform_10(%arg0: i32) -> (i32, i32) {
    %c0_i32 = arith.constant 0 : i32
    %c0_i32_0 = arith.constant 0 : i32
    %c0_i32_1 = arith.constant 0 : i32
    return %c0_i32, %c0_i32_0 : i32, i32
  }
  func.func @transform_11(%arg0: i32) -> (i32, i32) {
    %c0_i32 = arith.constant 0 : i32
    %c0_i32_0 = arith.constant 0 : i32
    %c0_i32_1 = arith.constant 0 : i32
    return %c0_i32, %c0_i32_0 : i32, i32
  }
  func.func @transform_12(%arg0: i32) -> (i32, i32) {
    %c0_i32 = arith.constant 0 : i32
    %c0_i32_0 = arith.constant 0 : i32
    %c0_i32_1 = arith.constant 0 : i32
    return %c0_i32, %c0_i32_0 : i32, i32
  }
  func.func @transform_13(%arg0: i32) -> (i32, i32) {
    %c0_i32 = arith.constant 0 : i32
    %c0_i32_0 = arith.constant 0 : i32
    %c0_i32_1 = arith.constant 0 : i32
    return %c0_i32, %c0_i32_0 : i32, i32
  }
  func.func @transform_14(%arg0: i32) -> (i32, i32, i32) {
    %c0_i32 = arith.constant 0 : i32
    %c0_i32_0 = arith.constant 0 : i32
    %c0_i32_1 = arith.constant 0 : i32
    return %arg0, %c0_i32, %c0_i32_0 : i32, i32, i32
  }
}

</mosaic_0001>

<llo_original>
// kernel: tpu_custom_call.1
$region0: #{tpu_custom_call.1}
  #allocation0 [shape = 'u32[]', space=smem, size = 0x4, offset = 0x4, fixed_abs, tag = 'smem constant byte address 0x4 - core index']
  #allocation1 [shape = 'u32[144,128]{1,0:T(1,128)}', space=vmem, size = 0x12000, scoped, tag = 'internal scratch']
  %s0 = inlined_call_operand.vmem [shape: f32[2,8,32], index: 0, kind: input, shape index: {}]
  %s1 = inlined_call_operand.vmem [shape: f32[1,32], index: 1, kind: input, shape index: {}]
  %s2 = inlined_call_operand.vmem [shape: f32[1,32], index: 2, kind: input, shape index: {}]
  %s3 = inlined_call_operand.vmem [shape: bf16[4,32,8], index: 3, kind: input, shape index: {}]
  %s4 = inlined_call_operand.vmem [shape: bf16[4,32,8], index: 4, kind: input, shape index: {}]
  %s5 = inlined_call_operand.vmem [shape: bf16[4,32,8], index: 5, kind: input, shape index: {}]
  %s6 = inlined_call_operand.vmem [shape: bf16[4,8,32], index: 6, kind: input, shape index: {}]
  %s7 = inlined_call_operand.vmem [shape: f32[1,32], index: 7, kind: input, shape index: {}]
  %s8 = inlined_call_operand.vmem [shape: f32[1,32], index: 8, kind: input, shape index: {}]
  %s9 = inlined_call_operand.vmem [shape: f32[1,32], index: 9, kind: input, shape index: {}]
  %s10 = inlined_call_operand.vmem [shape: bf16[32,128], index: 10, kind: input, shape index: {}]
  %s11 = inlined_call_operand.vmem [shape: f32[1,128], index: 11, kind: input, shape index: {}]
  %s12 = inlined_call_operand.vmem [shape: bf16[128,32], index: 12, kind: input, shape index: {}]
  %s13 = inlined_call_operand.vmem [shape: f32[1,32], index: 13, kind: input, shape index: {}]
  %s14 = inlined_call_operand.hbm [shape: f32[2,8,32], index: 14, kind: output, shape index: {}]
  %s15 = sld [smem:[#allocation0]]
  $region89: #{tpu_custom_call.1} parent=0
    _
  %s17 = ssub.s32 1, %s15
  %s18 = scalar_select 0, %s17, %s15
  $region1: #{tpu_custom_call.1} parent=0
    #allocation2 [shape = 'u8[8192]{0}', space=vmem, size = 0x2000, scoped, tag = 'output window, operand 0']
    #allocation3 [shape = 's32[2]{0}', space=sflag, size = 0x8, scoped, tag = 'scoped memory for tpu_custom_call.1']
    %19 = vsyncpa [#allocation3], 0
    %s20 = scalar_lea.sflag [#allocation3], 1
    %21 = vsyncpa %s20, 0
    loop: start=0, step=1, limit=4
    $region2: #{tpu_custom_call.1} parent=1 // loop_pre_header
      _
    $region3: #{tpu_custom_call.1} parent=1 // loop_header
      %s23 = sphi 0, %s27
      %p24 = scmp.ge.s32.totalorder %s23, 4
      %s33 = sphi 0, %s35
      %s36 = sphi 0, %s33
      %s37 = sphi 0, %s36
      %s53 = sphi 0, %s37
      %s57 = sphi 0, %s57
      %s59 = sphi 0, %s57
      %s60 = sphi 0, %s59
      %s74 = sphi 0, %s60
      %s78 = sphi 0, %s78
      %s80 = sphi 0, %s78
      %s81 = sphi 0, %s80
      %s95 = sphi 0, %s81
      %s99 = sphi 0, %s99
      %s101 = sphi 0, %s99
      %s102 = sphi 0, %s101
      %s116 = sphi 0, %s102
      %s120 = sphi 0, %s120
      %s122 = sphi 0, %s120
      %s123 = sphi 0, %s122
      %s137 = sphi 0, %s123
      %s141 = sphi 0, %s141
      %s143 = sphi 0, %s141
      %s144 = sphi 0, %s143
      %s158 = sphi 0, %s144
      %s162 = sphi 0, %s162
      %s164 = sphi 0, %s162
      %s165 = sphi 0, %s164
      %s179 = sphi 0, %s165
      %s183 = sphi 0, %s183
      %s185 = sphi 0, %s183
      %s186 = sphi 0, %s185
      %s200 = sphi 0, %s186
      %s204 = sphi 0, %s204
      %s206 = sphi 0, %s204
      %s207 = sphi 0, %s206
      %s221 = sphi 0, %s207
      %s225 = sphi 0, %s225
      %s227 = sphi 0, %s225
      %s228 = sphi 0, %s227
      %s242 = sphi 0, %s228
      %s246 = sphi 0, %s246
      %s248 = sphi 0, %s246
      %s249 = sphi 0, %s248
      %s263 = sphi 0, %s249
      %s267 = sphi 0, %s267
      %s269 = sphi 0, %s267
      %s270 = sphi 0, %s269
      %s284 = sphi 0, %s270
      %s288 = sphi 0, %s288
      %s290 = sphi 0, %s288
      %s291 = sphi 0, %s290
      %s305 = sphi 0, %s291
      %s309 = sphi 0, %s309
      %s311 = sphi 0, %s309
      %s312 = sphi 0, %s311
      %s326 = sphi 0, %s312
      %s332 = sphi 0, %s334
      %s335 = sphi 0, %s332
      %s336 = sphi 0, %s335
      %s352 = sphi 0, %s336
    $region4: #{tpu_custom_call.1} parent=1 // loop_header_branch
      %26 = sbr.rel (%p24) target = $region8
    $region5: #{tpu_custom_call.1} parent=1 // loop_body
      %s28 = ssub.s32 %s23, 1
      %s29 = ssub.s32 %s23, 2
      %s30 = sadd.s32 %s23, 1
      %s31 = ssub.s32 %s23, %s30
      %p32 = scmp.eq.s32.totalorder %s31, 0
      %s34 = sadd.s32 %s33, 1
      %s35 = scalar_select %p32, %s33, %s34
      %p38 = pneg %p32
      %p39 = scmp.eq.s32.totalorder %s23, 1
      %p40 = por %p38, %p39
      %p41 = scmp.ne.s32.totalorder %s33, %s36
      %p42 = scmp.eq.s32.totalorder %s23, 0
      %p43 = por %p41, %p42
      %p44 = scmp.ne.s32.totalorder %s33, %s36
      %p45 = scmp.eq.s32.totalorder %s28, 1
      %p46 = por %p44, %p45
      %p47 = scmp.ne.s32.totalorder %s36, %s37
      %p48 = scmp.eq.s32.totalorder %s28, 0
      %p49 = por %p47, %p48
      %p50 = scmp.ne.s32.totalorder %s36, %s37
      %p51 = scmp.eq.s32.totalorder %s29, 1
      %p52 = por %p50, %p51
      %p54 = scmp.ne.s32.totalorder %s37, %s53
      %p55 = scmp.eq.s32.totalorder %s29, 0
      %p56 = por %p54, %p55
      %s58 = sadd.s32 %s57, 1
      %p61 = scmp.eq.s32.totalorder %s23, 1
      %p62 = scmp.ne.s32.totalorder %s57, %s59
      %p63 = scmp.eq.s32.totalorder %s23, 0
      %p64 = por %p62, %p63
      %p65 = scmp.ne.s32.totalorder %s57, %s59
      %p66 = scmp.eq.s32.totalorder %s28, 1
      %p67 = por %p65, %p66
      %p68 = scmp.ne.s32.totalorder %s59, %s60
      %p69 = scmp.eq.s32.totalorder %s28, 0
      %p70 = por %p68, %p69
      %p71 = scmp.ne.s32.totalorder %s59, %s60
      %p72 = scmp.eq.s32.totalorder %s29, 1
      %p73 = por %p71, %p72
      %p75 = scmp.ne.s32.totalorder %s60, %s74
      %p76 = scmp.eq.s32.totalorder %s29, 0
      %p77 = por %p75, %p76
      %s79 = sadd.s32 %s78, 1
      %p82 = scmp.eq.s32.totalorder %s23, 1
      %p83 = scmp.ne.s32.totalorder %s78, %s80
      %p84 = scmp.eq.s32.totalorder %s23, 0
      %p85 = por %p83, %p84
      %p86 = scmp.ne.s32.totalorder %s78, %s80
      %p87 = scmp.eq.s32.totalorder %s28, 1
      %p88 = por %p86, %p87
      %p89 = scmp.ne.s32.totalorder %s80, %s81
      %p90 = scmp.eq.s32.totalorder %s28, 0
      %p91 = por %p89, %p90
      %p92 = scmp.ne.s32.totalorder %s80, %s81
      %p93 = scmp.eq.s32.totalorder %s29, 1
      %p94 = por %p92, %p93
      %p96 = scmp.ne.s32.totalorder %s81, %s95
      %p97 = scmp.eq.s32.totalorder %s29, 0
      %p98 = por %p96, %p97
      %s100 = sadd.s32 %s99, 1
      %p103 = scmp.eq.s32.totalorder %s23, 1
      %p104 = scmp.ne.s32.totalorder %s99, %s101
      %p105 = scmp.eq.s32.totalorder %s23, 0
      %p106 = por %p104, %p105
      %p107 = scmp.ne.s32.totalorder %s99, %s101
      %p108 = scmp.eq.s32.totalorder %s28, 1
      %p109 = por %p107, %p108
      %p110 = scmp.ne.s32.totalorder %s101, %s102
      %p111 = scmp.eq.s32.totalorder %s28, 0
      %p112 = por %p110, %p111
      %p113 = scmp.ne.s32.totalorder %s101, %s102
      %p114 = scmp.eq.s32.totalorder %s29, 1
      %p115 = por %p113, %p114
      %p117 = scmp.ne.s32.totalorder %s102, %s116
      %p118 = scmp.eq.s32.totalorder %s29, 0
      %p119 = por %p117, %p118
      %s121 = sadd.s32 %s120, 1
      %p124 = scmp.eq.s32.totalorder %s23, 1
      %p125 = scmp.ne.s32.totalorder %s120, %s122
      %p126 = scmp.eq.s32.totalorder %s23, 0
      %p127 = por %p125, %p126
      %p128 = scmp.ne.s32.totalorder %s120, %s122
      %p129 = scmp.eq.s32.totalorder %s28, 1
      %p130 = por %p128, %p129
      %p131 = scmp.ne.s32.totalorder %s122, %s123
      %p132 = scmp.eq.s32.totalorder %s28, 0
      %p133 = por %p131, %p132
      %p134 = scmp.ne.s32.totalorder %s122, %s123
      %p135 = scmp.eq.s32.totalorder %s29, 1
      %p136 = por %p134, %p135
      %p138 = scmp.ne.s32.totalorder %s123, %s137
      %p139 = scmp.eq.s32.totalorder %s29, 0
      %p140 = por %p138, %p139
      %s142 = sadd.s32 %s141, 1
      %p145 = scmp.eq.s32.totalorder %s23, 1
      %p146 = scmp.ne.s32.totalorder %s141, %s143
      %p147 = scmp.eq.s32.totalorder %s23, 0
      %p148 = por %p146, %p147
      %p149 = scmp.ne.s32.totalorder %s141, %s143
      %p150 = scmp.eq.s32.totalorder %s28, 1
      %p151 = por %p149, %p150
      %p152 = scmp.ne.s32.totalorder %s143, %s144
      %p153 = scmp.eq.s32.totalorder %s28, 0
      %p154 = por %p152, %p153
      %p155 = scmp.ne.s32.totalorder %s143, %s144
      %p156 = scmp.eq.s32.totalorder %s29, 1
      %p157 = por %p155, %p156
      %p159 = scmp.ne.s32.totalorder %s144, %s158
      %p160 = scmp.eq.s32.totalorder %s29, 0
      %p161 = por %p159, %p160
      %s163 = sadd.s32 %s162, 1
      %p166 = scmp.eq.s32.totalorder %s23, 1
      %p167 = scmp.ne.s32.totalorder %s162, %s164
      %p168 = scmp.eq.s32.totalorder %s23, 0
      %p169 = por %p167, %p168
      %p170 = scmp.ne.s32.totalorder %s162, %s164
      %p171 = scmp.eq.s32.totalorder %s28, 1
      %p172 = por %p170, %p171
      %p173 = scmp.ne.s32.totalorder %s164, %s165
      %p174 = scmp.eq.s32.totalorder %s28, 0
      %p175 = por %p173, %p174
      %p176 = scmp.ne.s32.totalorder %s164, %s165
      %p177 = scmp.eq.s32.totalorder %s29, 1
      %p178 = por %p176, %p177
      %p180 = scmp.ne.s32.totalorder %s165, %s179
      %p181 = scmp.eq.s32.totalorder %s29, 0
      %p182 = por %p180, %p181
      %s184 = sadd.s32 %s183, 1
      %p187 = scmp.eq.s32.totalorder %s23, 1
      %p188 = scmp.ne.s32.totalorder %s183, %s185
      %p189 = scmp.eq.s32.totalorder %s23, 0
      %p190 = por %p188, %p189
      %p191 = scmp.ne.s32.totalorder %s183, %s185
      %p192 = scmp.eq.s32.totalorder %s28, 1
      %p193 = por %p191, %p192
      %p194 = scmp.ne.s32.totalorder %s185, %s186
      %p195 = scmp.eq.s32.totalorder %s28, 0
      %p196 = por %p194, %p195
      %p197 = scmp.ne.s32.totalorder %s185, %s186
      %p198 = scmp.eq.s32.totalorder %s29, 1
      %p199 = por %p197, %p198
      %p201 = scmp.ne.s32.totalorder %s186, %s200
      %p202 = scmp.eq.s32.totalorder %s29, 0
      %p203 = por %p201, %p202
      %s205 = sadd.s32 %s204, 1
      %p208 = scmp.eq.s32.totalorder %s23, 1
      %p209 = scmp.ne.s32.totalorder %s204, %s206
      %p210 = scmp.eq.s32.totalorder %s23, 0
      %p211 = por %p209, %p210
      %p212 = scmp.ne.s32.totalorder %s204, %s206
      %p213 = scmp.eq.s32.totalorder %s28, 1
      %p214 = por %p212, %p213
      %p215 = scmp.ne.s32.totalorder %s206, %s207
      %p216 = scmp.eq.s32.totalorder %s28, 0
      %p217 = por %p215, %p216
      %p218 = scmp.ne.s32.totalorder %s206, %s207
      %p219 = scmp.eq.s32.totalorder %s29, 1
      %p220 = por %p218, %p219
      %p222 = scmp.ne.s32.totalorder %s207, %s221
      %p223 = scmp.eq.s32.totalorder %s29, 0
      %p224 = por %p222, %p223
      %s226 = sadd.s32 %s225, 1
      %p229 = scmp.eq.s32.totalorder %s23, 1
      %p230 = scmp.ne.s32.totalorder %s225, %s227
      %p231 = scmp.eq.s32.totalorder %s23, 0
      %p232 = por %p230, %p231
      %p233 = scmp.ne.s32.totalorder %s225, %s227
      %p234 = scmp.eq.s32.totalorder %s28, 1
      %p235 = por %p233, %p234
      %p236 = scmp.ne.s32.totalorder %s227, %s228
      %p237 = scmp.eq.s32.totalorder %s28, 0
      %p238 = por %p236, %p237
      %p239 = scmp.ne.s32.totalorder %s227, %s228
      %p240 = scmp.eq.s32.totalorder %s29, 1
      %p241 = por %p239, %p240
      %p243 = scmp.ne.s32.totalorder %s228, %s242
      %p244 = scmp.eq.s32.totalorder %s29, 0
      %p245 = por %p243, %p244
      %s247 = sadd.s32 %s246, 1
      %p250 = scmp.eq.s32.totalorder %s23, 1
      %p251 = scmp.ne.s32.totalorder %s246, %s248
      %p252 = scmp.eq.s32.totalorder %s23, 0
      %p253 = por %p251, %p252
      %p254 = scmp.ne.s32.totalorder %s246, %s248
      %p255 = scmp.eq.s32.totalorder %s28, 1
      %p256 = por %p254, %p255
      %p257 = scmp.ne.s32.totalorder %s248, %s249
      %p258 = scmp.eq.s32.totalorder %s28, 0
      %p259 = por %p257, %p258
      %p260 = scmp.ne.s32.totalorder %s248, %s249
      %p261 = scmp.eq.s32.totalorder %s29, 1
      %p262 = por %p260, %p261
      %p264 = scmp.ne.s32.totalorder %s249, %s263
      %p265 = scmp.eq.s32.totalorder %s29, 0
      %p266 = por %p264, %p265
      %s268 = sadd.s32 %s267, 1
      %p271 = scmp.eq.s32.totalorder %s23, 1
      %p272 = scmp.ne.s32.totalorder %s267, %s269
      %p273 = scmp.eq.s32.totalorder %s23, 0
      %p274 = por %p272, %p273
      %p275 = scmp.ne.s32.totalorder %s267, %s269
      %p276 = scmp.eq.s32.totalorder %s28, 1
      %p277 = por %p275, %p276
      %p278 = scmp.ne.s32.totalorder %s269, %s270
      %p279 = scmp.eq.s32.totalorder %s28, 0
      %p280 = por %p278, %p279
      %p281 = scmp.ne.s32.totalorder %s269, %s270
      %p282 = scmp.eq.s32.totalorder %s29, 1
      %p283 = por %p281, %p282
      %p285 = scmp.ne.s32.totalorder %s270, %s284
      %p286 = scmp.eq.s32.totalorder %s29, 0
      %p287 = por %p285, %p286
      %s289 = sadd.s32 %s288, 1
      %p292 = scmp.eq.s32.totalorder %s23, 1
      %p293 = scmp.ne.s32.totalorder %s288, %s290
      %p294 = scmp.eq.s32.totalorder %s23, 0
      %p295 = por %p293, %p294
      %p296 = scmp.ne.s32.totalorder %s288, %s290
      %p297 = scmp.eq.s32.totalorder %s28, 1
      %p298 = por %p296, %p297
      %p299 = scmp.ne.s32.totalorder %s290, %s291
      %p300 = scmp.eq.s32.totalorder %s28, 0
      %p301 = por %p299, %p300
      %p302 = scmp.ne.s32.totalorder %s290, %s291
      %p303 = scmp.eq.s32.totalorder %s29, 1
      %p304 = por %p302, %p303
      %p306 = scmp.ne.s32.totalorder %s291, %s305
      %p307 = scmp.eq.s32.totalorder %s29, 0
      %p308 = por %p306, %p307
      %s310 = sadd.s32 %s309, 1
      %p313 = scmp.eq.s32.totalorder %s23, 1
      %p314 = scmp.ne.s32.totalorder %s309, %s311
      %p315 = scmp.eq.s32.totalorder %s23, 0
      %p316 = por %p314, %p315
      %p317 = scmp.ne.s32.totalorder %s309, %s311
      %p318 = scmp.eq.s32.totalorder %s28, 1
      %p319 = por %p317, %p318
      %p320 = scmp.ne.s32.totalorder %s311, %s312
      %p321 = scmp.eq.s32.totalorder %s28, 0
      %p322 = por %p320, %p321
      %p323 = scmp.ne.s32.totalorder %s311, %s312
      %p324 = scmp.eq.s32.totalorder %s29, 1
      %p325 = por %p323, %p324
      %p327 = scmp.ne.s32.totalorder %s312, %s326
      %p328 = scmp.eq.s32.totalorder %s29, 0
      %p329 = por %p327, %p328
      %s330 = ssub.s32 %s23, %s30
      %p331 = scmp.eq.s32.totalorder %s330, 0
      %s333 = sadd.s32 %s332, 1
      %s334 = scalar_select %p331, %s332, %s333
      %p337 = pneg %p331
      %p338 = scmp.eq.s32.totalorder %s23, 1
      %p339 = por %p337, %p338
      %p340 = scmp.ne.s32.totalorder %s332, %s335
      %p341 = scmp.eq.s32.totalorder %s23, 0
      %p342 = por %p340, %p341
      %p343 = scmp.ne.s32.totalorder %s332, %s335
      %p344 = scmp.eq.s32.totalorder %s28, 1
      %p345 = por %p343, %p344
      %p346 = scmp.ne.s32.totalorder %s335, %s336
      %p347 = scmp.eq.s32.totalorder %s28, 0
      %p348 = por %p346, %p347
      %p349 = scmp.ne.s32.totalorder %s335, %s336
      %p350 = scmp.eq.s32.totalorder %s29, 1
      %p351 = por %p349, %p350
      %p353 = scmp.ne.s32.totalorder %s336, %s352
      %p354 = scmp.eq.s32.totalorder %s29, 0
      %p355 = por %p353, %p354
      %p356 = scmp.le.s32.totalorder 1, %s23
      %p357 = scmp.lt.s32.totalorder %s23, 3
      %p358 = pnand %p356, %p357
      %p359 = pneg %p358
      // Predicated region
      $region9: #{tpu_custom_call.1} parent=5 // pred_check
        _
      $region10: #{tpu_custom_call.1} parent=5 // pred_check_branch
        %361 = sbr.rel (%p358) target = $region12
      $region11: #{tpu_custom_call.1} parent=5 // pred_region
        %s362 = ssub.s32 %s23, 1
        // Predicated region
        $region13: #{tpu_custom_call.1} parent=11 // pred_check
          %p363 = pneg %p70
        $region14: #{tpu_custom_call.1} parent=11 // pred_check_branch
          %365 = sbr.rel (%p363) target = $region16
        $region15: #{tpu_custom_call.1} parent=11 // pred_region
          _
        $region16: #{tpu_custom_call.1} parent=11 // pred_fallthru
          _
        // Predicated region
        $region17: #{tpu_custom_call.1} parent=11 // pred_check
          %p366 = pneg %p91
        $region18: #{tpu_custom_call.1} parent=11 // pred_check_branch
          %368 = sbr.rel (%p366) target = $region20
        $region19: #{tpu_custom_call.1} parent=11 // pred_region
          _
        $region20: #{tpu_custom_call.1} parent=11 // pred_fallthru
          _
        // Predicated region
        $region21: #{tpu_custom_call.1} parent=11 // pred_check
          %p369 = pneg %p112
        $region22: #{tpu_custom_call.1} parent=11 // pred_check_branch
          %371 = sbr.rel (%p369) target = $region24
        $region23: #{tpu_custom_call.1} parent=11 // pred_region
          _
        $region24: #{tpu_custom_call.1} parent=11 // pred_fallthru
          _
        // Predicated region
        $region25: #{tpu_custom_call.1} parent=11 // pred_check
          %p372 = pneg %p133
        $region26: #{tpu_custom_call.1} parent=11 // pred_check_branch
          %374 = sbr.rel (%p372) target = $region28
        $region27: #{tpu_custom_call.1} parent=11 // pred_region
          _
        $region28: #{tpu_custom_call.1} parent=11 // pred_fallthru
          _
        // Predicated region
        $region29: #{tpu_custom_call.1} parent=11 // pred_check
          %p375 = pneg %p154
        $region30: #{tpu_custom_call.1} parent=11 // pred_check_branch
          %377 = sbr.rel (%p375) target = $region32
        $region31: #{tpu_custom_call.1} parent=11 // pred_region
          _
        $region32: #{tpu_custom_call.1} parent=11 // pred_fallthru
          _
        // Predicated region
        $region33: #{tpu_custom_call.1} parent=11 // pred_check
          %p378 = pneg %p175
        $region34: #{tpu_custom_call.1} parent=11 // pred_check_branch
          %380 = sbr.rel (%p378) target = $region36
        $region35: #{tpu_custom_call.1} parent=11 // pred_region
          _
        $region36: #{tpu_custom_call.1} parent=11 // pred_fallthru
          _
        // Predicated region
        $region37: #{tpu_custom_call.1} parent=11 // pred_check
          %p381 = pneg %p196
        $region38: #{tpu_custom_call.1} parent=11 // pred_check_branch
          %383 = sbr.rel (%p381) target = $region40
        $region39: #{tpu_custom_call.1} parent=11 // pred_region
          _
        $region40: #{tpu_custom_call.1} parent=11 // pred_fallthru
          _
        // Predicated region
        $region41: #{tpu_custom_call.1} parent=11 // pred_check
          %p384 = pneg %p217
        $region42: #{tpu_custom_call.1} parent=11 // pred_check_branch
          %386 = sbr.rel (%p384) target = $region44
        $region43: #{tpu_custom_call.1} parent=11 // pred_region
          _
        $region44: #{tpu_custom_call.1} parent=11 // pred_fallthru
          _
        // Predicated region
        $region45: #{tpu_custom_call.1} parent=11 // pred_check
          %p387 = pneg %p238
        $region46: #{tpu_custom_call.1} parent=11 // pred_check_branch
          %389 = sbr.rel (%p387) target = $region48
        $region47: #{tpu_custom_call.1} parent=11 // pred_region
          _
        $region48: #{tpu_custom_call.1} parent=11 // pred_fallthru
          _
        // Predicated region
        $region49: #{tpu_custom_call.1} parent=11 // pred_check
          %p390 = pneg %p259
        $region50: #{tpu_custom_call.1} parent=11 // pred_check_branch
          %392 = sbr.rel (%p390) target = $region52
        $region51: #{tpu_custom_call.1} parent=11 // pred_region
          _
        $region52: #{tpu_custom_call.1} parent=11 // pred_fallthru
          _
        // Predicated region
        $region53: #{tpu_custom_call.1} parent=11 // pred_check
          %p393 = pneg %p280
        $region54: #{tpu_custom_call.1} parent=11 // pred_check_branch
          %395 = sbr.rel (%p393) target = $region56
        $region55: #{tpu_custom_call.1} parent=11 // pred_region
          _
        $region56: #{tpu_custom_call.1} parent=11 // pred_fallthru
          _
        // Predicated region
        $region57: #{tpu_custom_call.1} parent=11 // pred_check
          %p396 = pneg %p301
        $region58: #{tpu_custom_call.1} parent=11 // pred_check_branch
          %398 = sbr.rel (%p396) target = $region60
        $region59: #{tpu_custom_call.1} parent=11 // pred_region
          _
        $region60: #{tpu_custom_call.1} parent=11 // pred_fallthru
          _
        // Predicated region
        $region61: #{tpu_custom_call.1} parent=11 // pred_check
          %p399 = pneg %p322
        $region62: #{tpu_custom_call.1} parent=11 // pred_check_branch
          %401 = sbr.rel (%p399) target = $region64
        $region63: #{tpu_custom_call.1} parent=11 // pred_region
          _
        $region64: #{tpu_custom_call.1} parent=11 // pred_fallthru
          _
      $region12: #{tpu_custom_call.1} parent=5 // pred_fallthru
        _
      %p402 = scmp.lt.s32.totalorder %s23, 2
      // Predicated region
      $region65: #{tpu_custom_call.1} parent=5 // pred_check
        %p403 = pneg %p402
      $region66: #{tpu_custom_call.1} parent=5 // pred_check_branch
        %405 = sbr.rel (%p403) target = $region68
      $region67: #{tpu_custom_call.1} parent=5 // pred_region
        // Predicated region
        $region69: #{tpu_custom_call.1} parent=67 // pred_check
          %p406 = pneg %p43
        $region70: #{tpu_custom_call.1} parent=67 // pred_check_branch
          %408 = sbr.rel (%p406) target = $region72
        $region71: #{tpu_custom_call.1} parent=67 // pred_region
          %p409 = scmp.lt.s32.totalorder %s23, 1
          %s410 = scalar_select %p409, %s23, 1
          %s411 = smul.addr %s410, 8
          %s412 = scalar_lea.vmem %s0, %s411
        $region72: #{tpu_custom_call.1} parent=67 // pred_fallthru
          _
      $region68: #{tpu_custom_call.1} parent=5 // pred_fallthru
        _
      %p413 = scmp.le.s32.totalorder 1, %s23
      %p414 = scmp.lt.s32.totalorder %s23, 3
      %p415 = pnand %p413, %p414
      %p416 = pneg %p415
      // Predicated region
      $region73: #{tpu_custom_call.1} parent=5 // pred_check
        _
      $region74: #{tpu_custom_call.1} parent=5 // pred_check_branch
        %418 = sbr.rel (%p415) target = $region76
      $region75: #{tpu_custom_call.1} parent=5 // pred_region
        %s419 = ssub.s32 %s23, 1
        %p420 = scmp.lt.s32.totalorder %s28, 1
        %s421 = scalar_select %p420, %s28, 1
        %s422 = smul.addr %s421, 8
        %s423 = scalar_lea.vmem %s0, %s422
        %p424 = pneg %p49
        %p425 = pneg %p46
        %p426 = pneg %p70
        %p427 = pneg %p67
        %p428 = pneg %p91
        %p429 = pneg %p88
        %p430 = pneg %p112
        %p431 = pneg %p109
        %p432 = pneg %p133
        %p433 = pneg %p130
        %p434 = pneg %p154
        %p435 = pneg %p151
        %p436 = pneg %p175
        %p437 = pneg %p172
        %p438 = pneg %p196
        %p439 = pneg %p193
        %p440 = pneg %p217
        %p441 = pneg %p214
        %p442 = pneg %p238
        %p443 = pneg %p235
        %p444 = pneg %p259
        %p445 = pneg %p256
        %p446 = pneg %p280
        %p447 = pneg %p277
        %p448 = pneg %p301
        %p449 = pneg %p298
        %p450 = pneg %p322
        %p451 = pneg %p319
        %p452 = pneg %p348
        %p453 = pneg %p345
        %s454 = sand.u32 %s335, 1
        %s455 = scalar_lea.sflag [#allocation3], %s454
        %s456 = sand.u32 %s335, 1
        %s457 = smul.addr %s456, 8
        %s458 = scalar_lea.vmem [#allocation2], %s457
        %p459 = scmp.lt.s32.totalorder %s28, 1
        %s460 = scalar_select %p459, %s28, 1
        %s461 = smul.addr %s460, 8
        %s462 = scalar_lea.vmem %s0, %s461
        %v464 = vld [vmem:[%s462] sm:$0xff]
        %vm465 = vcmask 261120
        %v466 = vsel %vm465, %v464, 0.0
        %467 = vadd.xlane.f32.xlu0 %v466
        %v468 = vpop.xlane.xlu0 %467
        %v469 = vrcp.pop 32.0
        %v470 = vmul.f32 %v468, %v469
        %v471 = vsub.f32 %v464, %v470
        %v472 = vmul.f32 %v471, %v471
        %v473 = vsel %vm465, %v472, 0.0
        %474 = vadd.xlane.f32.xlu0 %v473
        %v475 = vpop.xlane.xlu0 %474
        %v476 = vmul.f32 %v475, %v469
        %v477 = vadd.f32 %v476, 1e-05
        %v478 = vrsqrt.pop %v477
        %v479 = vmul.f32 %v471, %v478
        %v480 = vld [vmem:[%s1] sm:$0x1]
        %v482 = vlaneseq
        %v483 = vshrl.u32 %v482, 7
        %v484 = vsub.s32 0, %v483
        %v485 = vrot.slane %v480, %v484
        %v487 = vmul.f32 %v479, %v485
        %v488 = vld [vmem:[%s2] sm:$0x1]
        %v490 = vlaneseq
        %v491 = vshrl.u32 %v490, 7
        %v492 = vsub.s32 0, %v491
        %v493 = vrot.slane %v488, %v492
        %v495 = vadd.f32 %v487, %v493
        %v496 = vpack.c.bf16 %v495, %v495
        %v497 = vld [vmem:[%s3] sm:$0xf]
        %v498 = vld [vmem:[%s3 + $0x4] sm:$0xf]
        %v499 = vld [vmem:[%s3 + $0x8] sm:$0xf]
        %v500 = vld [vmem:[%s3 + $0xc] sm:$0xf]
        %v501 = vld [vmem:[%s3 + $0x10] sm:$0xf]
        %v502 = vld [vmem:[%s3 + $0x14] sm:$0xf]
        %v503 = vld [vmem:[%s3 + $0x18] sm:$0xf]
        %v504 = vld [vmem:[%s3 + $0x1c] sm:$0xf]
        %v505 = vld [vmem:[%s3 + $0x20] sm:$0xf]
        %v506 = vld [vmem:[%s3 + $0x24] sm:$0xf]
        %v507 = vld [vmem:[%s3 + $0x28] sm:$0xf]
        %v508 = vld [vmem:[%s3 + $0x2c] sm:$0xf]
        %v509 = vld [vmem:[%s3 + $0x30] sm:$0xf]
        %v510 = vld [vmem:[%s3 + $0x34] sm:$0xf]
        %v511 = vld [vmem:[%s3 + $0x38] sm:$0xf]
        %v512 = vld [vmem:[%s3 + $0x3c] sm:$0xf]
        %v517 = vunpack.c.l.b16 %v497
        %v518 = vunpack.c.l.b16 %v498
        %v519 = vunpack.c.l.b16 %v499
        %v520 = vunpack.c.l.b16 %v500
        %v521 = vpack.c.b16 %v518, %v517
        %v522 = vpack.c.b16 %v520, %v519
        %v526 = vsel %vm465, %v496, 0
        %528 = vmatprep.subr.bf16.mxu0 0
        %529 = vmatpush1.bf16.msra.mxu0 0
        %530 = vmatprep.subr.bf16.mxu0 0
        %531 = vmatpush1.bf16.msra.mxu0 0
        %532 = vmatprep.subr.bf16.mxu0 0
        %533 = vmatpush1.bf16.msra.mxu0 0
        %534 = vmatprep.subr.bf16.mxu0 0
        %535 = vmatpush1.bf16.msra.mxu0 0
        %536 = vmatprep.subr.bf16.mxu0 0
        %537 = vmatpush1.bf16.msra.mxu0 0
        %538 = vmatprep.subr.bf16.mxu0 0
        %539 = vmatpush1.bf16.msra.mxu0 0
        %540 = vmatprep.subr.bf16.mxu0 0
        %541 = vmatpush1.bf16.msra.mxu0 %v522
        %542 = vmatprep.subr.bf16.mxu0 0
        %543 = vmatpush1.bf16.msra.mxu0 %v521
        %544 = vmatprep.subr.bf16.mxu0 0
        %545 = vmatpush2.bf16.msra.mxu0 0
        %546 = vmatprep.subr.bf16.mxu0 0
        %547 = vmatpush2.bf16.msra.mxu0 0
        %548 = vmatprep.subr.bf16.mxu0 0
        %549 = vmatpush2.bf16.msra.mxu0 0
        %550 = vmatprep.subr.bf16.mxu0 0
        %551 = vmatpush2.bf16.msra.mxu0 0
        %552 = vmatprep.subr.bf16.mxu0 0
        %553 = vmatpush2.bf16.msra.mxu0 0
        %554 = vmatprep.subr.bf16.mxu0 0
        %555 = vmatpush2.bf16.msra.mxu0 0
        %556 = vmatprep.subr.bf16.mxu0 0
        %557 = vmatpush2.bf16.msra.mxu0 0
        %558 = vmatprep.subr.bf16.mxu0 0
        %559 = vmatpush2.bf16.msra.mxu0 0
        %560 = vmatprep.mubr.bf16.mxu0 0
        %561 = vmatmul.mubr.bf16.gmra.mxu0 %v526
        %v562 = vpop.f32.mrf.mxu0
        %v563 = vadd.f32 0.0, %v562
        %v564 = vpop.f32.mrf.mxu0
        %v565 = vpop.f32.mrf.mxu0
        %v566 = vpop.f32.mrf.mxu0
        %567 = vdwg.mxu0
        %v572 = vunpack.c.l.b16 %v501
        %v573 = vunpack.c.l.b16 %v502
        %v574 = vunpack.c.l.b16 %v503
        %v575 = vunpack.c.l.b16 %v504
        %v576 = vpack.c.b16 %v573, %v572
        %v577 = vpack.c.b16 %v575, %v574
        %580 = vmatprep.subr.bf16.mxu0 0
        %581 = vmatpush1.bf16.msra.mxu0 0
        %582 = vmatprep.subr.bf16.mxu0 0
        %583 = vmatpush1.bf16.msra.mxu0 0
        %584 = vmatprep.subr.bf16.mxu0 0
        %585 = vmatpush1.bf16.msra.mxu0 0
        %586 = vmatprep.subr.bf16.mxu0 0
        %587 = vmatpush1.bf16.msra.mxu0 0
        %588 = vmatprep.subr.bf16.mxu0 0
        %589 = vmatpush1.bf16.msra.mxu0 0
        %590 = vmatprep.subr.bf16.mxu0 0
        %591 = vmatpush1.bf16.msra.mxu0 0
        %592 = vmatprep.subr.bf16.mxu0 0
        %593 = vmatpush1.bf16.msra.mxu0 %v577
        %594 = vmatprep.subr.bf16.mxu0 0
        %595 = vmatpush1.bf16.msra.mxu0 %v576
        %596 = vmatprep.subr.bf16.mxu0 0
        %597 = vmatpush2.bf16.msra.mxu0 0
        %598 = vmatprep.subr.bf16.mxu0 0
        %599 = vmatpush2.bf16.msra.mxu0 0
        %600 = vmatprep.subr.bf16.mxu0 0
        %601 = vmatpush2.bf16.msra.mxu0 0
        %602 = vmatprep.subr.bf16.mxu0 0
        %603 = vmatpush2.bf16.msra.mxu0 0
        %604 = vmatprep.subr.bf16.mxu0 0
        %605 = vmatpush2.bf16.msra.mxu0 0
        %606 = vmatprep.subr.bf16.mxu0 0
        %607 = vmatpush2.bf16.msra.mxu0 0
        %608 = vmatprep.subr.bf16.mxu0 0
        %609 = vmatpush2.bf16.msra.mxu0 0
        %610 = vmatprep.subr.bf16.mxu0 0
        %611 = vmatpush2.bf16.msra.mxu0 0
        %612 = vmatprep.mubr.bf16.mxu0 0
        %613 = vmatmul.mubr.bf16.gmra.mxu0 %v526
        %v614 = vpop.f32.mrf.mxu0
        %v615 = vadd.f32 0.0, %v614
        %v616 = vpop.f32.mrf.mxu0
        %v617 = vpop.f32.mrf.mxu0
        %v618 = vpop.f32.mrf.mxu0
        %619 = vdwg.mxu0
        %v624 = vunpack.c.l.b16 %v505
        %v625 = vunpack.c.l.b16 %v506
        %v626 = vunpack.c.l.b16 %v507
        %v627 = vunpack.c.l.b16 %v508
        %v628 = vpack.c.b16 %v625, %v624
        %v629 = vpack.c.b16 %v627, %v626
        %632 = vmatprep.subr.bf16.mxu0 0
        %633 = vmatpush1.bf16.msra.mxu0 0
        %634 = vmatprep.subr.bf16.mxu0 0
        %635 = vmatpush1.bf16.msra.mxu0 0
        %636 = vmatprep.subr.bf16.mxu0 0
        %637 = vmatpush1.bf16.msra.mxu0 0
        %638 = vmatprep.subr.bf16.mxu0 0
        %639 = vmatpush1.bf16.msra.mxu0 0
        %640 = vmatprep.subr.bf16.mxu0 0
        %641 = vmatpush1.bf16.msra.mxu0 0
        %642 = vmatprep.subr.bf16.mxu0 0
        %643 = vmatpush1.bf16.msra.mxu0 0
        %644 = vmatprep.subr.bf16.mxu0 0
        %645 = vmatpush1.bf16.msra.mxu0 %v629
        %646 = vmatprep.subr.bf16.mxu0 0
        %647 = vmatpush1.bf16.msra.mxu0 %v628
        %648 = vmatprep.subr.bf16.mxu0 0
        %649 = vmatpush2.bf16.msra.mxu0 0
        %650 = vmatprep.subr.bf16.mxu0 0
        %651 = vmatpush2.bf16.msra.mxu0 0
        %652 = vmatprep.subr.bf16.mxu0 0
        %653 = vmatpush2.bf16.msra.mxu0 0
        %654 = vmatprep.subr.bf16.mxu0 0
        %655 = vmatpush2.bf16.msra.mxu0 0
        %656 = vmatprep.subr.bf16.mxu0 0
        %657 = vmatpush2.bf16.msra.mxu0 0
        %658 = vmatprep.subr.bf16.mxu0 0
        %659 = vmatpush2.bf16.msra.mxu0 0
        %660 = vmatprep.subr.bf16.mxu0 0
        %661 = vmatpush2.bf16.msra.mxu0 0
        %662 = vmatprep.subr.bf16.mxu0 0
        %663 = vmatpush2.bf16.msra.mxu0 0
        %664 = vmatprep.mubr.bf16.mxu0 0
        %665 = vmatmul.mubr.bf16.gmra.mxu0 %v526
        %v666 = vpop.f32.mrf.mxu0
        %v667 = vadd.f32 0.0, %v666
        %v668 = vpop.f32.mrf.mxu0
        %v669 = vpop.f32.mrf.mxu0
        %v670 = vpop.f32.mrf.mxu0
        %671 = vdwg.mxu0
        %v676 = vunpack.c.l.b16 %v509
        %v677 = vunpack.c.l.b16 %v510
        %v678 = vunpack.c.l.b16 %v511
        %v679 = vunpack.c.l.b16 %v512
        %v680 = vpack.c.b16 %v677, %v676
        %v681 = vpack.c.b16 %v679, %v678
        %684 = vmatprep.subr.bf16.mxu0 0
        %685 = vmatpush1.bf16.msra.mxu0 0
        %686 = vmatprep.subr.bf16.mxu0 0
        %687 = vmatpush1.bf16.msra.mxu0 0
        %688 = vmatprep.subr.bf16.mxu0 0
        %689 = vmatpush1.bf16.msra.mxu0 0
        %690 = vmatprep.subr.bf16.mxu0 0
        %691 = vmatpush1.bf16.msra.mxu0 0
        %692 = vmatprep.subr.bf16.mxu0 0
        %693 = vmatpush1.bf16.msra.mxu0 0
        %694 = vmatprep.subr.bf16.mxu0 0
        %695 = vmatpush1.bf16.msra.mxu0 0
        %696 = vmatprep.subr.bf16.mxu0 0
        %697 = vmatpush1.bf16.msra.mxu0 %v681
        %698 = vmatprep.subr.bf16.mxu0 0
        %699 = vmatpush1.bf16.msra.mxu0 %v680
        %700 = vmatprep.subr.bf16.mxu0 0
        %701 = vmatpush2.bf16.msra.mxu0 0
        %702 = vmatprep.subr.bf16.mxu0 0
        %703 = vmatpush2.bf16.msra.mxu0 0
        %704 = vmatprep.subr.bf16.mxu0 0
        %705 = vmatpush2.bf16.msra.mxu0 0
        %706 = vmatprep.subr.bf16.mxu0 0
        %707 = vmatpush2.bf16.msra.mxu0 0
        %708 = vmatprep.subr.bf16.mxu0 0
        %709 = vmatpush2.bf16.msra.mxu0 0
        %710 = vmatprep.subr.bf16.mxu0 0
        %711 = vmatpush2.bf16.msra.mxu0 0
        %712 = vmatprep.subr.bf16.mxu0 0
        %713 = vmatpush2.bf16.msra.mxu0 0
        %714 = vmatprep.subr.bf16.mxu0 0
        %715 = vmatpush2.bf16.msra.mxu0 0
        %716 = vmatprep.mubr.bf16.mxu0 0
        %717 = vmatmul.mubr.bf16.gmra.mxu0 %v526
        %v718 = vpop.f32.mrf.mxu0
        %v719 = vadd.f32 0.0, %v718
        %v720 = vpop.f32.mrf.mxu0
        %v721 = vpop.f32.mrf.mxu0
        %v722 = vpop.f32.mrf.mxu0
        %723 = vdwg.mxu0
        %v724 = vmul.f32 %v563, 0.35355338
        %v725 = vmul.f32 %v615, 0.35355338
        %v726 = vmul.f32 %v667, 0.35355338
        %v727 = vmul.f32 %v719, 0.35355338
        %v728 = vld [vmem:[%s4] sm:$0xf]
        %v729 = vld [vmem:[%s4 + $0x4] sm:$0xf]
        %v730 = vld [vmem:[%s4 + $0x8] sm:$0xf]
        %v731 = vld [vmem:[%s4 + $0xc] sm:$0xf]
        %v732 = vld [vmem:[%s4 + $0x10] sm:$0xf]
        %v733 = vld [vmem:[%s4 + $0x14] sm:$0xf]
        %v734 = vld [vmem:[%s4 + $0x18] sm:$0xf]
        %v735 = vld [vmem:[%s4 + $0x1c] sm:$0xf]
        %v736 = vld [vmem:[%s4 + $0x20] sm:$0xf]
        %v737 = vld [vmem:[%s4 + $0x24] sm:$0xf]
        %v738 = vld [vmem:[%s4 + $0x28] sm:$0xf]
        %v739 = vld [vmem:[%s4 + $0x2c] sm:$0xf]
        %v740 = vld [vmem:[%s4 + $0x30] sm:$0xf]
        %v741 = vld [vmem:[%s4 + $0x34] sm:$0xf]
        %v742 = vld [vmem:[%s4 + $0x38] sm:$0xf]
        %v743 = vld [vmem:[%s4 + $0x3c] sm:$0xf]
        %v748 = vunpack.c.l.b16 %v728
        %v749 = vunpack.c.l.b16 %v729
        %v750 = vunpack.c.l.b16 %v730
        %v751 = vunpack.c.l.b16 %v731
        %v752 = vpack.c.b16 %v749, %v748
        %v753 = vpack.c.b16 %v751, %v750
        %756 = vmatprep.subr.bf16.mxu0 0
        %757 = vmatpush1.bf16.msra.mxu0 0
        %758 = vmatprep.subr.bf16.mxu0 0
        %759 = vmatpush1.bf16.msra.mxu0 0
        %760 = vmatprep.subr.bf16.mxu0 0
        %761 = vmatpush1.bf16.msra.mxu0 0
        %762 = vmatprep.subr.bf16.mxu0 0
        %763 = vmatpush1.bf16.msra.mxu0 0
        %764 = vmatprep.subr.bf16.mxu0 0
        %765 = vmatpush1.bf16.msra.mxu0 0
        %766 = vmatprep.subr.bf16.mxu0 0
        %767 = vmatpush1.bf16.msra.mxu0 0
        %768 = vmatprep.subr.bf16.mxu0 0
        %769 = vmatpush1.bf16.msra.mxu0 %v753
        %770 = vmatprep.subr.bf16.mxu0 0
        %771 = vmatpush1.bf16.msra.mxu0 %v752
        %772 = vmatprep.subr.bf16.mxu0 0
        %773 = vmatpush2.bf16.msra.mxu0 0
        %774 = vmatprep.subr.bf16.mxu0 0
        %775 = vmatpush2.bf16.msra.mxu0 0
        %776 = vmatprep.subr.bf16.mxu0 0
        %777 = vmatpush2.bf16.msra.mxu0 0
        %778 = vmatprep.subr.bf16.mxu0 0
        %779 = vmatpush2.bf16.msra.mxu0 0
        %780 = vmatprep.subr.bf16.mxu0 0
        %781 = vmatpush2.bf16.msra.mxu0 0
        %782 = vmatprep.subr.bf16.mxu0 0
        %783 = vmatpush2.bf16.msra.mxu0 0
        %784 = vmatprep.subr.bf16.mxu0 0
        %785 = vmatpush2.bf16.msra.mxu0 0
        %786 = vmatprep.subr.bf16.mxu0 0
        %787 = vmatpush2.bf16.msra.mxu0 0
        %788 = vmatprep.mubr.bf16.mxu0 0
        %789 = vmatmul.mubr.bf16.gmra.mxu0 %v526
        %v790 = vpop.f32.mrf.mxu0
        %v791 = vadd.f32 0.0, %v790
        %v792 = vpop.f32.mrf.mxu0
        %v793 = vpop.f32.mrf.mxu0
        %v794 = vpop.f32.mrf.mxu0
        %795 = vdwg.mxu0
        %v800 = vunpack.c.l.b16 %v732
        %v801 = vunpack.c.l.b16 %v733
        %v802 = vunpack.c.l.b16 %v734
        %v803 = vunpack.c.l.b16 %v735
        %v804 = vpack.c.b16 %v801, %v800
        %v805 = vpack.c.b16 %v803, %v802
        %808 = vmatprep.subr.bf16.mxu0 0
        %809 = vmatpush1.bf16.msra.mxu0 0
        %810 = vmatprep.subr.bf16.mxu0 0
        %811 = vmatpush1.bf16.msra.mxu0 0
        %812 = vmatprep.subr.bf16.mxu0 0
        %813 = vmatpush1.bf16.msra.mxu0 0
        %814 = vmatprep.subr.bf16.mxu0 0
        %815 = vmatpush1.bf16.msra.mxu0 0
        %816 = vmatprep.subr.bf16.mxu0 0
        %817 = vmatpush1.bf16.msra.mxu0 0
        %818 = vmatprep.subr.bf16.mxu0 0
        %819 = vmatpush1.bf16.msra.mxu0 0
        %820 = vmatprep.subr.bf16.mxu0 0
        %821 = vmatpush1.bf16.msra.mxu0 %v805
        %822 = vmatprep.subr.bf16.mxu0 0
        %823 = vmatpush1.bf16.msra.mxu0 %v804
        %824 = vmatprep.subr.bf16.mxu0 0
        %825 = vmatpush2.bf16.msra.mxu0 0
        %826 = vmatprep.subr.bf16.mxu0 0
        %827 = vmatpush2.bf16.msra.mxu0 0
        %828 = vmatprep.subr.bf16.mxu0 0
        %829 = vmatpush2.bf16.msra.mxu0 0
        %830 = vmatprep.subr.bf16.mxu0 0
        %831 = vmatpush2.bf16.msra.mxu0 0
        %832 = vmatprep.subr.bf16.mxu0 0
        %833 = vmatpush2.bf16.msra.mxu0 0
        %834 = vmatprep.subr.bf16.mxu0 0
        %835 = vmatpush2.bf16.msra.mxu0 0
        %836 = vmatprep.subr.bf16.mxu0 0
        %837 = vmatpush2.bf16.msra.mxu0 0
        %838 = vmatprep.subr.bf16.mxu0 0
        %839 = vmatpush2.bf16.msra.mxu0 0
        %840 = vmatprep.mubr.bf16.mxu0 0
        %841 = vmatmul.mubr.bf16.gmra.mxu0 %v526
        %v842 = vpop.f32.mrf.mxu0
        %v843 = vadd.f32 0.0, %v842
        %v844 = vpop.f32.mrf.mxu0
        %v845 = vpop.f32.mrf.mxu0
        %v846 = vpop.f32.mrf.mxu0
        %847 = vdwg.mxu0
        %v852 = vunpack.c.l.b16 %v736
        %v853 = vunpack.c.l.b16 %v737
        %v854 = vunpack.c.l.b16 %v738
        %v855 = vunpack.c.l.b16 %v739
        %v856 = vpack.c.b16 %v853, %v852
        %v857 = vpack.c.b16 %v855, %v854
        %860 = vmatprep.subr.bf16.mxu0 0
        %861 = vmatpush1.bf16.msra.mxu0 0
        %862 = vmatprep.subr.bf16.mxu0 0
        %863 = vmatpush1.bf16.msra.mxu0 0
        %864 = vmatprep.subr.bf16.mxu0 0
        %865 = vmatpush1.bf16.msra.mxu0 0
        %866 = vmatprep.subr.bf16.mxu0 0
        %867 = vmatpush1.bf16.msra.mxu0 0
        %868 = vmatprep.subr.bf16.mxu0 0
        %869 = vmatpush1.bf16.msra.mxu0 0
        %870 = vmatprep.subr.bf16.mxu0 0
        %871 = vmatpush1.bf16.msra.mxu0 0
        %872 = vmatprep.subr.bf16.mxu0 0
        %873 = vmatpush1.bf16.msra.mxu0 %v857
        %874 = vmatprep.subr.bf16.mxu0 0
        %875 = vmatpush1.bf16.msra.mxu0 %v856
        %876 = vmatprep.subr.bf16.mxu0 0
        %877 = vmatpush2.bf16.msra.mxu0 0
        %878 = vmatprep.subr.bf16.mxu0 0
        %879 = vmatpush2.bf16.msra.mxu0 0
        %880 = vmatprep.subr.bf16.mxu0 0
        %881 = vmatpush2.bf16.msra.mxu0 0
        %882 = vmatprep.subr.bf16.mxu0 0
        %883 = vmatpush2.bf16.msra.mxu0 0
        %884 = vmatprep.subr.bf16.mxu0 0
        %885 = vmatpush2.bf16.msra.mxu0 0
        %886 = vmatprep.subr.bf16.mxu0 0
        %887 = vmatpush2.bf16.msra.mxu0 0
        %888 = vmatprep.subr.bf16.mxu0 0
        %889 = vmatpush2.bf16.msra.mxu0 0
        %890 = vmatprep.subr.bf16.mxu0 0
        %891 = vmatpush2.bf16.msra.mxu0 0
        %892 = vmatprep.mubr.bf16.mxu0 0
        %893 = vmatmul.mubr.bf16.gmra.mxu0 %v526
        %v894 = vpop.f32.mrf.mxu0
        %v895 = vadd.f32 0.0, %v894
        %v896 = vpop.f32.mrf.mxu0
        %v897 = vpop.f32.mrf.mxu0
        %v898 = vpop.f32.mrf.mxu0
        %899 = vdwg.mxu0
        %v904 = vunpack.c.l.b16 %v740
        %v905 = vunpack.c.l.b16 %v741
        %v906 = vunpack.c.l.b16 %v742
        %v907 = vunpack.c.l.b16 %v743
        %v908 = vpack.c.b16 %v905, %v904
        %v909 = vpack.c.b16 %v907, %v906
        %912 = vmatprep.subr.bf16.mxu0 0
        %913 = vmatpush1.bf16.msra.mxu0 0
        %914 = vmatprep.subr.bf16.mxu0 0
        %915 = vmatpush1.bf16.msra.mxu0 0
        %916 = vmatprep.subr.bf16.mxu0 0
        %917 = vmatpush1.bf16.msra.mxu0 0
        %918 = vmatprep.subr.bf16.mxu0 0
        %919 = vmatpush1.bf16.msra.mxu0 0
        %920 = vmatprep.subr.bf16.mxu0 0
        %921 = vmatpush1.bf16.msra.mxu0 0
        %922 = vmatprep.subr.bf16.mxu0 0
        %923 = vmatpush1.bf16.msra.mxu0 0
        %924 = vmatprep.subr.bf16.mxu0 0
        %925 = vmatpush1.bf16.msra.mxu0 %v909
        %926 = vmatprep.subr.bf16.mxu0 0
        %927 = vmatpush1.bf16.msra.mxu0 %v908
        %928 = vmatprep.subr.bf16.mxu0 0
        %929 = vmatpush2.bf16.msra.mxu0 0
        %930 = vmatprep.subr.bf16.mxu0 0
        %931 = vmatpush2.bf16.msra.mxu0 0
        %932 = vmatprep.subr.bf16.mxu0 0
        %933 = vmatpush2.bf16.msra.mxu0 0
        %934 = vmatprep.subr.bf16.mxu0 0
        %935 = vmatpush2.bf16.msra.mxu0 0
        %936 = vmatprep.subr.bf16.mxu0 0
        %937 = vmatpush2.bf16.msra.mxu0 0
        %938 = vmatprep.subr.bf16.mxu0 0
        %939 = vmatpush2.bf16.msra.mxu0 0
        %940 = vmatprep.subr.bf16.mxu0 0
        %941 = vmatpush2.bf16.msra.mxu0 0
        %942 = vmatprep.subr.bf16.mxu0 0
        %943 = vmatpush2.bf16.msra.mxu0 0
        %944 = vmatprep.mubr.bf16.mxu0 0
        %945 = vmatmul.mubr.bf16.gmra.mxu0 %v526
        %v946 = vpop.f32.mrf.mxu0
        %v947 = vadd.f32 0.0, %v946
        %v948 = vpop.f32.mrf.mxu0
        %v949 = vpop.f32.mrf.mxu0
        %v950 = vpop.f32.mrf.mxu0
        %951 = vdwg.mxu0
        %v952 = vld [vmem:[%s5] sm:$0xf]
        %v953 = vld [vmem:[%s5 + $0x4] sm:$0xf]
        %v954 = vld [vmem:[%s5 + $0x8] sm:$0xf]
        %v955 = vld [vmem:[%s5 + $0xc] sm:$0xf]
        %v956 = vld [vmem:[%s5 + $0x10] sm:$0xf]
        %v957 = vld [vmem:[%s5 + $0x14] sm:$0xf]
        %v958 = vld [vmem:[%s5 + $0x18] sm:$0xf]
        %v959 = vld [vmem:[%s5 + $0x1c] sm:$0xf]
        %v960 = vld [vmem:[%s5 + $0x20] sm:$0xf]
        %v961 = vld [vmem:[%s5 + $0x24] sm:$0xf]
        %v962 = vld [vmem:[%s5 + $0x28] sm:$0xf]
        %v963 = vld [vmem:[%s5 + $0x2c] sm:$0xf]
        %v964 = vld [vmem:[%s5 + $0x30] sm:$0xf]
        %v965 = vld [vmem:[%s5 + $0x34] sm:$0xf]
        %v966 = vld [vmem:[%s5 + $0x38] sm:$0xf]
        %v967 = vld [vmem:[%s5 + $0x3c] sm:$0xf]
        %v972 = vunpack.c.l.b16 %v952
        %v973 = vunpack.c.l.b16 %v953
        %v974 = vunpack.c.l.b16 %v954
        %v975 = vunpack.c.l.b16 %v955
        %v976 = vpack.c.b16 %v973, %v972
        %v977 = vpack.c.b16 %v975, %v974
        %980 = vmatprep.subr.bf16.mxu0 0
        %981 = vmatpush1.bf16.msra.mxu0 0
        %982 = vmatprep.subr.bf16.mxu0 0
        %983 = vmatpush1.bf16.msra.mxu0 0
        %984 = vmatprep.subr.bf16.mxu0 0
        %985 = vmatpush1.bf16.msra.mxu0 0
        %986 = vmatprep.subr.bf16.mxu0 0
        %987 = vmatpush1.bf16.msra.mxu0 0
        %988 = vmatprep.subr.bf16.mxu0 0
        %989 = vmatpush1.bf16.msra.mxu0 0
        %990 = vmatprep.subr.bf16.mxu0 0
        %991 = vmatpush1.bf16.msra.mxu0 0
        %992 = vmatprep.subr.bf16.mxu0 0
        %993 = vmatpush1.bf16.msra.mxu0 %v977
        %994 = vmatprep.subr.bf16.mxu0 0
        %995 = vmatpush1.bf16.msra.mxu0 %v976
        %996 = vmatprep.subr.bf16.mxu0 0
        %997 = vmatpush2.bf16.msra.mxu0 0
        %998 = vmatprep.subr.bf16.mxu0 0
        %999 = vmatpush2.bf16.msra.mxu0 0
        %1000 = vmatprep.subr.bf16.mxu0 0
        %1001 = vmatpush2.bf16.msra.mxu0 0
        %1002 = vmatprep.subr.bf16.mxu0 0
        %1003 = vmatpush2.bf16.msra.mxu0 0
        %1004 = vmatprep.subr.bf16.mxu0 0
        %1005 = vmatpush2.bf16.msra.mxu0 0
        %1006 = vmatprep.subr.bf16.mxu0 0
        %1007 = vmatpush2.bf16.msra.mxu0 0
        %1008 = vmatprep.subr.bf16.mxu0 0
        %1009 = vmatpush2.bf16.msra.mxu0 0
        %1010 = vmatprep.subr.bf16.mxu0 0
        %1011 = vmatpush2.bf16.msra.mxu0 0
        %1012 = vmatprep.mubr.bf16.mxu0 0
        %1013 = vmatmul.mubr.bf16.gmra.mxu0 %v526
        %v1014 = vpop.f32.mrf.mxu0
        %v1015 = vadd.f32 0.0, %v1014
        %v1016 = vpop.f32.mrf.mxu0
        %v1017 = vpop.f32.mrf.mxu0
        %v1018 = vpop.f32.mrf.mxu0
        %1019 = vdwg.mxu0
        %v1024 = vunpack.c.l.b16 %v956
        %v1025 = vunpack.c.l.b16 %v957
        %v1026 = vunpack.c.l.b16 %v958
        %v1027 = vunpack.c.l.b16 %v959
        %v1028 = vpack.c.b16 %v1025, %v1024
        %v1029 = vpack.c.b16 %v1027, %v1026
        %1032 = vmatprep.subr.bf16.mxu0 0
        %1033 = vmatpush1.bf16.msra.mxu0 0
        %1034 = vmatprep.subr.bf16.mxu0 0
        %1035 = vmatpush1.bf16.msra.mxu0 0
        %1036 = vmatprep.subr.bf16.mxu0 0
        %1037 = vmatpush1.bf16.msra.mxu0 0
        %1038 = vmatprep.subr.bf16.mxu0 0
        %1039 = vmatpush1.bf16.msra.mxu0 0
        %1040 = vmatprep.subr.bf16.mxu0 0
        %1041 = vmatpush1.bf16.msra.mxu0 0
        %1042 = vmatprep.subr.bf16.mxu0 0
        %1043 = vmatpush1.bf16.msra.mxu0 0
        %1044 = vmatprep.subr.bf16.mxu0 0
        %1045 = vmatpush1.bf16.msra.mxu0 %v1029
        %1046 = vmatprep.subr.bf16.mxu0 0
        %1047 = vmatpush1.bf16.msra.mxu0 %v1028
        %1048 = vmatprep.subr.bf16.mxu0 0
        %1049 = vmatpush2.bf16.msra.mxu0 0
        %1050 = vmatprep.subr.bf16.mxu0 0
        %1051 = vmatpush2.bf16.msra.mxu0 0
        %1052 = vmatprep.subr.bf16.mxu0 0
        %1053 = vmatpush2.bf16.msra.mxu0 0
        %1054 = vmatprep.subr.bf16.mxu0 0
        %1055 = vmatpush2.bf16.msra.mxu0 0
        %1056 = vmatprep.subr.bf16.mxu0 0
        %1057 = vmatpush2.bf16.msra.mxu0 0
        %1058 = vmatprep.subr.bf16.mxu0 0
        %1059 = vmatpush2.bf16.msra.mxu0 0
        %1060 = vmatprep.subr.bf16.mxu0 0
        %1061 = vmatpush2.bf16.msra.mxu0 0
        %1062 = vmatprep.subr.bf16.mxu0 0
        %1063 = vmatpush2.bf16.msra.mxu0 0
        %1064 = vmatprep.mubr.bf16.mxu0 0
        %1065 = vmatmul.mubr.bf16.gmra.mxu0 %v526
        %v1066 = vpop.f32.mrf.mxu0
        %v1067 = vadd.f32 0.0, %v1066
        %v1068 = vpop.f32.mrf.mxu0
        %v1069 = vpop.f32.mrf.mxu0
        %v1070 = vpop.f32.mrf.mxu0
        %1071 = vdwg.mxu0
        %v1076 = vunpack.c.l.b16 %v960
        %v1077 = vunpack.c.l.b16 %v961
        %v1078 = vunpack.c.l.b16 %v962
        %v1079 = vunpack.c.l.b16 %v963
        %v1080 = vpack.c.b16 %v1077, %v1076
        %v1081 = vpack.c.b16 %v1079, %v1078
        %1084 = vmatprep.subr.bf16.mxu0 0
        %1085 = vmatpush1.bf16.msra.mxu0 0
        %1086 = vmatprep.subr.bf16.mxu0 0
        %1087 = vmatpush1.bf16.msra.mxu0 0
        %1088 = vmatprep.subr.bf16.mxu0 0
        %1089 = vmatpush1.bf16.msra.mxu0 0
        %1090 = vmatprep.subr.bf16.mxu0 0
        %1091 = vmatpush1.bf16.msra.mxu0 0
        %1092 = vmatprep.subr.bf16.mxu0 0
        %1093 = vmatpush1.bf16.msra.mxu0 0
        %1094 = vmatprep.subr.bf16.mxu0 0
        %1095 = vmatpush1.bf16.msra.mxu0 0
        %1096 = vmatprep.subr.bf16.mxu0 0
        %1097 = vmatpush1.bf16.msra.mxu0 %v1081
        %1098 = vmatprep.subr.bf16.mxu0 0
        %1099 = vmatpush1.bf16.msra.mxu0 %v1080
        %1100 = vmatprep.subr.bf16.mxu0 0
        %1101 = vmatpush2.bf16.msra.mxu0 0
        %1102 = vmatprep.subr.bf16.mxu0 0
        %1103 = vmatpush2.bf16.msra.mxu0 0
        %1104 = vmatprep.subr.bf16.mxu0 0
        %1105 = vmatpush2.bf16.msra.mxu0 0
        %1106 = vmatprep.subr.bf16.mxu0 0
        %1107 = vmatpush2.bf16.msra.mxu0 0
        %1108 = vmatprep.subr.bf16.mxu0 0
        %1109 = vmatpush2.bf16.msra.mxu0 0
        %1110 = vmatprep.subr.bf16.mxu0 0
        %1111 = vmatpush2.bf16.msra.mxu0 0
        %1112 = vmatprep.subr.bf16.mxu0 0
        %1113 = vmatpush2.bf16.msra.mxu0 0
        %1114 = vmatprep.subr.bf16.mxu0 0
        %1115 = vmatpush2.bf16.msra.mxu0 0
        %1116 = vmatprep.mubr.bf16.mxu0 0
        %1117 = vmatmul.mubr.bf16.gmra.mxu0 %v526
        %v1118 = vpop.f32.mrf.mxu0
        %v1119 = vadd.f32 0.0, %v1118
        %v1120 = vpop.f32.mrf.mxu0
        %v1121 = vpop.f32.mrf.mxu0
        %v1122 = vpop.f32.mrf.mxu0
        %1123 = vdwg.mxu0
        %v1128 = vunpack.c.l.b16 %v964
        %v1129 = vunpack.c.l.b16 %v965
        %v1130 = vunpack.c.l.b16 %v966
        %v1131 = vunpack.c.l.b16 %v967
        %v1132 = vpack.c.b16 %v1129, %v1128
        %v1133 = vpack.c.b16 %v1131, %v1130
        %1136 = vmatprep.subr.bf16.mxu0 0
        %1137 = vmatpush1.bf16.msra.mxu0 0
        %1138 = vmatprep.subr.bf16.mxu0 0
        %1139 = vmatpush1.bf16.msra.mxu0 0
        %1140 = vmatprep.subr.bf16.mxu0 0
        %1141 = vmatpush1.bf16.msra.mxu0 0
        %1142 = vmatprep.subr.bf16.mxu0 0
        %1143 = vmatpush1.bf16.msra.mxu0 0
        %1144 = vmatprep.subr.bf16.mxu0 0
        %1145 = vmatpush1.bf16.msra.mxu0 0
        %1146 = vmatprep.subr.bf16.mxu0 0
        %1147 = vmatpush1.bf16.msra.mxu0 0
        %1148 = vmatprep.subr.bf16.mxu0 0
        %1149 = vmatpush1.bf16.msra.mxu0 %v1133
        %1150 = vmatprep.subr.bf16.mxu0 0
        %1151 = vmatpush1.bf16.msra.mxu0 %v1132
        %1152 = vmatprep.subr.bf16.mxu0 0
        %1153 = vmatpush2.bf16.msra.mxu0 0
        %1154 = vmatprep.subr.bf16.mxu0 0
        %1155 = vmatpush2.bf16.msra.mxu0 0
        %1156 = vmatprep.subr.bf16.mxu0 0
        %1157 = vmatpush2.bf16.msra.mxu0 0
        %1158 = vmatprep.subr.bf16.mxu0 0
        %1159 = vmatpush2.bf16.msra.mxu0 0
        %1160 = vmatprep.subr.bf16.mxu0 0
        %1161 = vmatpush2.bf16.msra.mxu0 0
        %1162 = vmatprep.subr.bf16.mxu0 0
        %1163 = vmatpush2.bf16.msra.mxu0 0
        %1164 = vmatprep.subr.bf16.mxu0 0
        %1165 = vmatpush2.bf16.msra.mxu0 0
        %1166 = vmatprep.subr.bf16.mxu0 0
        %1167 = vmatpush2.bf16.msra.mxu0 0
        %1168 = vmatprep.mubr.bf16.mxu0 0
        %1169 = vmatmul.mubr.bf16.gmra.mxu0 %v526
        %v1170 = vpop.f32.mrf.mxu0
        %v1171 = vadd.f32 0.0, %v1170
        %v1172 = vpop.f32.mrf.mxu0
        %v1173 = vpop.f32.mrf.mxu0
        %v1174 = vpop.f32.mrf.mxu0
        %1175 = vdwg.mxu0
        %v1176 = vpack.c.bf16 %v724, %v724
        %v1177 = vpack.c.bf16 %v725, %v725
        %v1178 = vpack.c.bf16 %v726, %v726
        %v1179 = vpack.c.bf16 %v727, %v727
        %v1180 = vpack.c.bf16 %v791, %v791
        %v1181 = vpack.c.bf16 %v843, %v843
        %v1182 = vpack.c.bf16 %v895, %v895
        %v1183 = vpack.c.bf16 %v947, %v947
        %vm1184 = vcmask 64512
        %v1186 = vsel %vm1184, %v1176, 0
        %v1189 = vsel %vm1184, %v1180, 0
        %1191 = vmatprep.subr.bf16.mxu0 0
        %1192 = vmatpush1.bf16.xpose.msra.mxu0 0
        %1193 = vmatprep.subr.bf16.mxu0 0
        %1194 = vmatpush1.bf16.xpose.msra.mxu0 0
        %1195 = vmatprep.subr.bf16.mxu0 0
        %1196 = vmatpush1.bf16.xpose.msra.mxu0 0
        %1197 = vmatprep.subr.bf16.mxu0 0
        %1198 = vmatpush1.bf16.xpose.msra.mxu0 0
        %1199 = vmatprep.subr.bf16.mxu0 0
        %1200 = vmatpush1.bf16.xpose.msra.mxu0 0
        %1201 = vmatprep.subr.bf16.mxu0 0
        %1202 = vmatpush1.bf16.xpose.msra.mxu0 0
        %1203 = vmatprep.subr.bf16.mxu0 0
        %1204 = vmatpush1.bf16.xpose.msra.mxu0 0
        %1205 = vmatprep.subr.bf16.mxu0 0
        %1206 = vmatpush1.bf16.xpose.msra.mxu0 %v1189
        %1207 = vmatprep.subr.bf16.mxu0 0
        %1208 = vmatpush2.bf16.xpose.msra.mxu0 0
        %1209 = vmatprep.subr.bf16.mxu0 0
        %1210 = vmatpush2.bf16.xpose.msra.mxu0 0
        %1211 = vmatprep.subr.bf16.mxu0 0
        %1212 = vmatpush2.bf16.xpose.msra.mxu0 0
        %1213 = vmatprep.subr.bf16.mxu0 0
        %1214 = vmatpush2.bf16.xpose.msra.mxu0 0
        %1215 = vmatprep.subr.bf16.mxu0 0
        %1216 = vmatpush2.bf16.xpose.msra.mxu0 0
        %1217 = vmatprep.subr.bf16.mxu0 0
        %1218 = vmatpush2.bf16.xpose.msra.mxu0 0
        %1219 = vmatprep.subr.bf16.mxu0 0
        %1220 = vmatpush2.bf16.xpose.msra.mxu0 0
        %1221 = vmatprep.subr.bf16.mxu0 0
        %1222 = vmatpush2.bf16.xpose.msra.mxu0 0
        %1223 = vmatprep.mubr.bf16.mxu0 0
        %1224 = vmatmul.mubr.bf16.gmra.mxu0 %v1186
        %v1225 = vpop.f32.mrf.mxu0
        %v1226 = vadd.f32 0.0, %v1225
        %v1227 = vpop.f32.mrf.mxu0
        %v1228 = vpop.f32.mrf.mxu0
        %v1229 = vpop.f32.mrf.mxu0
        %1230 = vdwg.mxu0
        %v1232 = vsel %vm1184, %v1177, 0
        %v1235 = vsel %vm1184, %v1181, 0
        %1237 = vmatprep.subr.bf16.mxu0 0
        %1238 = vmatpush1.bf16.xpose.msra.mxu0 0
        %1239 = vmatprep.subr.bf16.mxu0 0
        %1240 = vmatpush1.bf16.xpose.msra.mxu0 0
        %1241 = vmatprep.subr.bf16.mxu0 0
        %1242 = vmatpush1.bf16.xpose.msra.mxu0 0
        %1243 = vmatprep.subr.bf16.mxu0 0
        %1244 = vmatpush1.bf16.xpose.msra.mxu0 0
        %1245 = vmatprep.subr.bf16.mxu0 0
        %1246 = vmatpush1.bf16.xpose.msra.mxu0 0
        %1247 = vmatprep.subr.bf16.mxu0 0
        %1248 = vmatpush1.bf16.xpose.msra.mxu0 0
        %1249 = vmatprep.subr.bf16.mxu0 0
        %1250 = vmatpush1.bf16.xpose.msra.mxu0 0
        %1251 = vmatprep.subr.bf16.mxu0 0
        %1252 = vmatpush1.bf16.xpose.msra.mxu0 %v1235
        %1253 = vmatprep.subr.bf16.mxu0 0
        %1254 = vmatpush2.bf16.xpose.msra.mxu0 0
        %1255 = vmatprep.subr.bf16.mxu0 0
        %1256 = vmatpush2.bf16.xpose.msra.mxu0 0
        %1257 = vmatprep.subr.bf16.mxu0 0
        %1258 = vmatpush2.bf16.xpose.msra.mxu0 0
        %1259 = vmatprep.subr.bf16.mxu0 0
        %1260 = vmatpush2.bf16.xpose.msra.mxu0 0
        %1261 = vmatprep.subr.bf16.mxu0 0
        %1262 = vmatpush2.bf16.xpose.msra.mxu0 0
        %1263 = vmatprep.subr.bf16.mxu0 0
        %1264 = vmatpush2.bf16.xpose.msra.mxu0 0
        %1265 = vmatprep.subr.bf16.mxu0 0
        %1266 = vmatpush2.bf16.xpose.msra.mxu0 0
        %1267 = vmatprep.subr.bf16.mxu0 0
        %1268 = vmatpush2.bf16.xpose.msra.mxu0 0
        %1269 = vmatprep.mubr.bf16.mxu0 0
        %1270 = vmatmul.mubr.bf16.gmra.mxu0 %v1232
        %v1271 = vpop.f32.mrf.mxu0
        %v1272 = vadd.f32 0.0, %v1271
        %v1273 = vpop.f32.mrf.mxu0
        %v1274 = vpop.f32.mrf.mxu0
        %v1275 = vpop.f32.mrf.mxu0
        %1276 = vdwg.mxu0
        %v1278 = vsel %vm1184, %v1178, 0
        %v1281 = vsel %vm1184, %v1182, 0
        %1283 = vmatprep.subr.bf16.mxu0 0
        %1284 = vmatpush1.bf16.xpose.msra.mxu0 0
        %1285 = vmatprep.subr.bf16.mxu0 0
        %1286 = vmatpush1.bf16.xpose.msra.mxu0 0
        %1287 = vmatprep.subr.bf16.mxu0 0
        %1288 = vmatpush1.bf16.xpose.msra.mxu0 0
        %1289 = vmatprep.subr.bf16.mxu0 0
        %1290 = vmatpush1.bf16.xpose.msra.mxu0 0
        %1291 = vmatprep.subr.bf16.mxu0 0
        %1292 = vmatpush1.bf16.xpose.msra.mxu0 0
        %1293 = vmatprep.subr.bf16.mxu0 0
        %1294 = vmatpush1.bf16.xpose.msra.mxu0 0
        %1295 = vmatprep.subr.bf16.mxu0 0
        %1296 = vmatpush1.bf16.xpose.msra.mxu0 0
        %1297 = vmatprep.subr.bf16.mxu0 0
        %1298 = vmatpush1.bf16.xpose.msra.mxu0 %v1281
        %1299 = vmatprep.subr.bf16.mxu0 0
        %1300 = vmatpush2.bf16.xpose.msra.mxu0 0
        %1301 = vmatprep.subr.bf16.mxu0 0
        %1302 = vmatpush2.bf16.xpose.msra.mxu0 0
        %1303 = vmatprep.subr.bf16.mxu0 0
        %1304 = vmatpush2.bf16.xpose.msra.mxu0 0
        %1305 = vmatprep.subr.bf16.mxu0 0
        %1306 = vmatpush2.bf16.xpose.msra.mxu0 0
        %1307 = vmatprep.subr.bf16.mxu0 0
        %1308 = vmatpush2.bf16.xpose.msra.mxu0 0
        %1309 = vmatprep.subr.bf16.mxu0 0
        %1310 = vmatpush2.bf16.xpose.msra.mxu0 0
        %1311 = vmatprep.subr.bf16.mxu0 0
        %1312 = vmatpush2.bf16.xpose.msra.mxu0 0
        %1313 = vmatprep.subr.bf16.mxu0 0
        %1314 = vmatpush2.bf16.xpose.msra.mxu0 0
        %1315 = vmatprep.mubr.bf16.mxu0 0
        %1316 = vmatmul.mubr.bf16.gmra.mxu0 %v1278
        %v1317 = vpop.f32.mrf.mxu0
        %v1318 = vadd.f32 0.0, %v1317
        %v1319 = vpop.f32.mrf.mxu0
        %v1320 = vpop.f32.mrf.mxu0
        %v1321 = vpop.f32.mrf.mxu0
        %1322 = vdwg.mxu0
        %v1324 = vsel %vm1184, %v1179, 0
        %v1327 = vsel %vm1184, %v1183, 0
        %1329 = vmatprep.subr.bf16.mxu0 0
        %1330 = vmatpush1.bf16.xpose.msra.mxu0 0
        %1331 = vmatprep.subr.bf16.mxu0 0
        %1332 = vmatpush1.bf16.xpose.msra.mxu0 0
        %1333 = vmatprep.subr.bf16.mxu0 0
        %1334 = vmatpush1.bf16.xpose.msra.mxu0 0
        %1335 = vmatprep.subr.bf16.mxu0 0
        %1336 = vmatpush1.bf16.xpose.msra.mxu0 0
        %1337 = vmatprep.subr.bf16.mxu0 0
        %1338 = vmatpush1.bf16.xpose.msra.mxu0 0
        %1339 = vmatprep.subr.bf16.mxu0 0
        %1340 = vmatpush1.bf16.xpose.msra.mxu0 0
        %1341 = vmatprep.subr.bf16.mxu0 0
        %1342 = vmatpush1.bf16.xpose.msra.mxu0 0
        %1343 = vmatprep.subr.bf16.mxu0 0
        %1344 = vmatpush1.bf16.xpose.msra.mxu0 %v1327
        %1345 = vmatprep.subr.bf16.mxu0 0
        %1346 = vmatpush2.bf16.xpose.msra.mxu0 0
        %1347 = vmatprep.subr.bf16.mxu0 0
        %1348 = vmatpush2.bf16.xpose.msra.mxu0 0
        %1349 = vmatprep.subr.bf16.mxu0 0
        %1350 = vmatpush2.bf16.xpose.msra.mxu0 0
        %1351 = vmatprep.subr.bf16.mxu0 0
        %1352 = vmatpush2.bf16.xpose.msra.mxu0 0
        %1353 = vmatprep.subr.bf16.mxu0 0
        %1354 = vmatpush2.bf16.xpose.msra.mxu0 0
        %1355 = vmatprep.subr.bf16.mxu0 0
        %1356 = vmatpush2.bf16.xpose.msra.mxu0 0
        %1357 = vmatprep.subr.bf16.mxu0 0
        %1358 = vmatpush2.bf16.xpose.msra.mxu0 0
        %1359 = vmatprep.subr.bf16.mxu0 0
        %1360 = vmatpush2.bf16.xpose.msra.mxu0 0
        %1361 = vmatprep.mubr.bf16.mxu0 0
        %1362 = vmatmul.mubr.bf16.gmra.mxu0 %v1324
        %v1363 = vpop.f32.mrf.mxu0
        %v1364 = vadd.f32 0.0, %v1363
        %v1365 = vpop.f32.mrf.mxu0
        %v1366 = vpop.f32.mrf.mxu0
        %v1367 = vpop.f32.mrf.mxu0
        %1368 = vdwg.mxu0
        %v1369 = vlaneseq
        %v1370 = vshrl.u32 %v1369, 7
        %v1371 = vlaneseq
        %v1372 = vand.u32 %v1371, 127
        %vm1373 = vcmp.ge.s32.totalorder %v1370, %v1372
        %v1374 = vsel %vm1373, 1, 0
        %vm1375 = vcmp.eq.s32.totalorder %v1374, 1
        %v1376 = vsel %vm1375, %v1226, -1e+30
        %v1377 = vsel %vm1375, %v1272, -1e+30
        %v1378 = vsel %vm1375, %v1318, -1e+30
        %v1379 = vsel %vm1375, %v1364, -1e+30
        %v1380 = vsel %vm1184, %v1376, -inf
        %1381 = vmax.xlane.f32.xlu0 %v1380
        %v1382 = vpop.xlane.xlu0 %1381
        %v1383 = vsel %vm1184, %v1377, -inf
        %1384 = vmax.xlane.f32.xlu0 %v1383
        %v1385 = vpop.xlane.xlu0 %1384
        %v1386 = vsel %vm1184, %v1378, -inf
        %1387 = vmax.xlane.f32.xlu0 %v1386
        %v1388 = vpop.xlane.xlu0 %1387
        %v1389 = vsel %vm1184, %v1379, -inf
        %1390 = vmax.xlane.f32.xlu0 %v1389
        %v1391 = vpop.xlane.xlu0 %1390
        %v1392 = vsub.f32 %v1376, %v1382
        %v1393 = vsub.f32 %v1377, %v1385
        %v1394 = vsub.f32 %v1378, %v1388
        %v1395 = vsub.f32 %v1379, %v1391
        %v1396 = vmul.f32 %v1392, 1.442695
        %v1397 = vpow.pop %v1396
        %v1398 = vmul.f32 %v1393, 1.442695
        %v1399 = vpow.pop %v1398
        %v1400 = vmul.f32 %v1394, 1.442695
        %v1401 = vpow.pop %v1400
        %v1402 = vmul.f32 %v1395, 1.442695
        %v1403 = vpow.pop %v1402
        %v1404 = vsel %vm1184, %v1397, 0.0
        %1405 = vadd.xlane.f32.xlu0 %v1404
        %v1406 = vpop.xlane.xlu0 %1405
        %v1407 = vsel %vm1184, %v1399, 0.0
        %1408 = vadd.xlane.f32.xlu0 %v1407
        %v1409 = vpop.xlane.xlu0 %1408
        %v1410 = vsel %vm1184, %v1401, 0.0
        %1411 = vadd.xlane.f32.xlu0 %v1410
        %v1412 = vpop.xlane.xlu0 %1411
        %v1413 = vsel %vm1184, %v1403, 0.0
        %1414 = vadd.xlane.f32.xlu0 %v1413
        %v1415 = vpop.xlane.xlu0 %1414
        %v1416 = vrcp.pop %v1406
        %v1417 = vrcp.pop %v1409
        %v1418 = vrcp.pop %v1412
        %v1419 = vrcp.pop %v1415
        %v1420 = vmul.f32 %v1397, %v1416
        %v1421 = vmul.f32 %v1399, %v1417
        %v1422 = vmul.f32 %v1401, %v1418
        %v1423 = vmul.f32 %v1403, %v1419
        %v1424 = vpack.c.bf16 %v1420, %v1420
        %v1425 = vpack.c.bf16 %v1421, %v1421
        %v1426 = vpack.c.bf16 %v1422, %v1422
        %v1427 = vpack.c.bf16 %v1423, %v1423
        %v1428 = vpack.c.bf16 %v1015, %v1015
        %v1429 = vpack.c.bf16 %v1067, %v1067
        %v1430 = vpack.c.bf16 %v1119, %v1119
        %v1431 = vpack.c.bf16 %v1171, %v1171
        %v1433 = vsel %vm1184, %v1424, 0
        %vm1435 = vcmask 1043456
        %v1437 = vsel %vm1435, %v1428, 0
        %1439 = vmatprep.subr.bf16.mxu0 0
        %1440 = vmatpush1.bf16.msra.mxu0 0
        %1441 = vmatprep.subr.bf16.mxu0 0
        %1442 = vmatpush1.bf16.msra.mxu0 0
        %1443 = vmatprep.subr.bf16.mxu0 0
        %1444 = vmatpush1.bf16.msra.mxu0 0
        %1445 = vmatprep.subr.bf16.mxu0 0
        %1446 = vmatpush1.bf16.msra.mxu0 0
        %1447 = vmatprep.subr.bf16.mxu0 0
        %1448 = vmatpush1.bf16.msra.mxu0 0
        %1449 = vmatprep.subr.bf16.mxu0 0
        %1450 = vmatpush1.bf16.msra.mxu0 0
        %1451 = vmatprep.subr.bf16.mxu0 0
        %1452 = vmatpush1.bf16.msra.mxu0 0
        %1453 = vmatprep.subr.bf16.mxu0 0
        %1454 = vmatpush1.bf16.msra.mxu0 %v1437
        %1455 = vmatprep.subr.bf16.mxu0 0
        %1456 = vmatpush2.bf16.msra.mxu0 0
        %1457 = vmatprep.subr.bf16.mxu0 0
        %1458 = vmatpush2.bf16.msra.mxu0 0
        %1459 = vmatprep.subr.bf16.mxu0 0
        %1460 = vmatpush2.bf16.msra.mxu0 0
        %1461 = vmatprep.subr.bf16.mxu0 0
        %1462 = vmatpush2.bf16.msra.mxu0 0
        %1463 = vmatprep.subr.bf16.mxu0 0
        %1464 = vmatpush2.bf16.msra.mxu0 0
        %1465 = vmatprep.subr.bf16.mxu0 0
        %1466 = vmatpush2.bf16.msra.mxu0 0
        %1467 = vmatprep.subr.bf16.mxu0 0
        %1468 = vmatpush2.bf16.msra.mxu0 0
        %1469 = vmatprep.subr.bf16.mxu0 0
        %1470 = vmatpush2.bf16.msra.mxu0 0
        %1471 = vmatprep.mubr.bf16.mxu0 0
        %1472 = vmatmul.mubr.bf16.gmra.mxu0 %v1433
        %v1473 = vpop.f32.mrf.mxu0
        %v1474 = vadd.f32 0.0, %v1473
        %v1475 = vpop.f32.mrf.mxu0
        %v1476 = vpop.f32.mrf.mxu0
        %v1477 = vpop.f32.mrf.mxu0
        %1478 = vdwg.mxu0
        %v1480 = vsel %vm1184, %v1425, 0
        %v1483 = vsel %vm1435, %v1429, 0
        %1485 = vmatprep.subr.bf16.mxu0 0
        %1486 = vmatpush1.bf16.msra.mxu0 0
        %1487 = vmatprep.subr.bf16.mxu0 0
        %1488 = vmatpush1.bf16.msra.mxu0 0
        %1489 = vmatprep.subr.bf16.mxu0 0
        %1490 = vmatpush1.bf16.msra.mxu0 0
        %1491 = vmatprep.subr.bf16.mxu0 0
        %1492 = vmatpush1.bf16.msra.mxu0 0
        %1493 = vmatprep.subr.bf16.mxu0 0
        %1494 = vmatpush1.bf16.msra.mxu0 0
        %1495 = vmatprep.subr.bf16.mxu0 0
        %1496 = vmatpush1.bf16.msra.mxu0 0
        %1497 = vmatprep.subr.bf16.mxu0 0
        %1498 = vmatpush1.bf16.msra.mxu0 0
        %1499 = vmatprep.subr.bf16.mxu0 0
        %1500 = vmatpush1.bf16.msra.mxu0 %v1483
        %1501 = vmatprep.subr.bf16.mxu0 0
        %1502 = vmatpush2.bf16.msra.mxu0 0
        %1503 = vmatprep.subr.bf16.mxu0 0
        %1504 = vmatpush2.bf16.msra.mxu0 0
        %1505 = vmatprep.subr.bf16.mxu0 0
        %1506 = vmatpush2.bf16.msra.mxu0 0
        %1507 = vmatprep.subr.bf16.mxu0 0
        %1508 = vmatpush2.bf16.msra.mxu0 0
        %1509 = vmatprep.subr.bf16.mxu0 0
        %1510 = vmatpush2.bf16.msra.mxu0 0
        %1511 = vmatprep.subr.bf16.mxu0 0
        %1512 = vmatpush2.bf16.msra.mxu0 0
        %1513 = vmatprep.subr.bf16.mxu0 0
        %1514 = vmatpush2.bf16.msra.mxu0 0
        %1515 = vmatprep.subr.bf16.mxu0 0
        %1516 = vmatpush2.bf16.msra.mxu0 0
        %1517 = vmatprep.mubr.bf16.mxu0 0
        %1518 = vmatmul.mubr.bf16.gmra.mxu0 %v1480
        %v1519 = vpop.f32.mrf.mxu0
        %v1520 = vadd.f32 0.0, %v1519
        %v1521 = vpop.f32.mrf.mxu0
        %v1522 = vpop.f32.mrf.mxu0
        %v1523 = vpop.f32.mrf.mxu0
        %1524 = vdwg.mxu0
        %v1526 = vsel %vm1184, %v1426, 0
        %v1529 = vsel %vm1435, %v1430, 0
        %1531 = vmatprep.subr.bf16.mxu0 0
        %1532 = vmatpush1.bf16.msra.mxu0 0
        %1533 = vmatprep.subr.bf16.mxu0 0
        %1534 = vmatpush1.bf16.msra.mxu0 0
        %1535 = vmatprep.subr.bf16.mxu0 0
        %1536 = vmatpush1.bf16.msra.mxu0 0
        %1537 = vmatprep.subr.bf16.mxu0 0
        %1538 = vmatpush1.bf16.msra.mxu0 0
        %1539 = vmatprep.subr.bf16.mxu0 0
        %1540 = vmatpush1.bf16.msra.mxu0 0
        %1541 = vmatprep.subr.bf16.mxu0 0
        %1542 = vmatpush1.bf16.msra.mxu0 0
        %1543 = vmatprep.subr.bf16.mxu0 0
        %1544 = vmatpush1.bf16.msra.mxu0 0
        %1545 = vmatprep.subr.bf16.mxu0 0
        %1546 = vmatpush1.bf16.msra.mxu0 %v1529
        %1547 = vmatprep.subr.bf16.mxu0 0
        %1548 = vmatpush2.bf16.msra.mxu0 0
        %1549 = vmatprep.subr.bf16.mxu0 0
        %1550 = vmatpush2.bf16.msra.mxu0 0
        %1551 = vmatprep.subr.bf16.mxu0 0
        %1552 = vmatpush2.bf16.msra.mxu0 0
        %1553 = vmatprep.subr.bf16.mxu0 0
        %1554 = vmatpush2.bf16.msra.mxu0 0
        %1555 = vmatprep.subr.bf16.mxu0 0
        %1556 = vmatpush2.bf16.msra.mxu0 0
        %1557 = vmatprep.subr.bf16.mxu0 0
        %1558 = vmatpush2.bf16.msra.mxu0 0
        %1559 = vmatprep.subr.bf16.mxu0 0
        %1560 = vmatpush2.bf16.msra.mxu0 0
        %1561 = vmatprep.subr.bf16.mxu0 0
        %1562 = vmatpush2.bf16.msra.mxu0 0
        %1563 = vmatprep.mubr.bf16.mxu0 0
        %1564 = vmatmul.mubr.bf16.gmra.mxu0 %v1526
        %v1565 = vpop.f32.mrf.mxu0
        %v1566 = vadd.f32 0.0, %v1565
        %v1567 = vpop.f32.mrf.mxu0
        %v1568 = vpop.f32.mrf.mxu0
        %v1569 = vpop.f32.mrf.mxu0
        %1570 = vdwg.mxu0
        %v1572 = vsel %vm1184, %v1427, 0
        %v1575 = vsel %vm1435, %v1431, 0
        %1577 = vmatprep.subr.bf16.mxu0 0
        %1578 = vmatpush1.bf16.msra.mxu0 0
        %1579 = vmatprep.subr.bf16.mxu0 0
        %1580 = vmatpush1.bf16.msra.mxu0 0
        %1581 = vmatprep.subr.bf16.mxu0 0
        %1582 = vmatpush1.bf16.msra.mxu0 0
        %1583 = vmatprep.subr.bf16.mxu0 0
        %1584 = vmatpush1.bf16.msra.mxu0 0
        %1585 = vmatprep.subr.bf16.mxu0 0
        %1586 = vmatpush1.bf16.msra.mxu0 0
        %1587 = vmatprep.subr.bf16.mxu0 0
        %1588 = vmatpush1.bf16.msra.mxu0 0
        %1589 = vmatprep.subr.bf16.mxu0 0
        %1590 = vmatpush1.bf16.msra.mxu0 0
        %1591 = vmatprep.subr.bf16.mxu0 0
        %1592 = vmatpush1.bf16.msra.mxu0 %v1575
        %1593 = vmatprep.subr.bf16.mxu0 0
        %1594 = vmatpush2.bf16.msra.mxu0 0
        %1595 = vmatprep.subr.bf16.mxu0 0
        %1596 = vmatpush2.bf16.msra.mxu0 0
        %1597 = vmatprep.subr.bf16.mxu0 0
        %1598 = vmatpush2.bf16.msra.mxu0 0
        %1599 = vmatprep.subr.bf16.mxu0 0
        %1600 = vmatpush2.bf16.msra.mxu0 0
        %1601 = vmatprep.subr.bf16.mxu0 0
        %1602 = vmatpush2.bf16.msra.mxu0 0
        %1603 = vmatprep.subr.bf16.mxu0 0
        %1604 = vmatpush2.bf16.msra.mxu0 0
        %1605 = vmatprep.subr.bf16.mxu0 0
        %1606 = vmatpush2.bf16.msra.mxu0 0
        %1607 = vmatprep.subr.bf16.mxu0 0
        %1608 = vmatpush2.bf16.msra.mxu0 0
        %1609 = vmatprep.mubr.bf16.mxu0 0
        %1610 = vmatmul.mubr.bf16.gmra.mxu0 %v1572
        %v1611 = vpop.f32.mrf.mxu0
        %v1612 = vadd.f32 0.0, %v1611
        %v1613 = vpop.f32.mrf.mxu0
        %v1614 = vpop.f32.mrf.mxu0
        %v1615 = vpop.f32.mrf.mxu0
        %1616 = vdwg.mxu0
        %v1617 = vpack.c.bf16 %v1474, %v1474
        %v1618 = vpack.c.bf16 %v1520, %v1520
        %v1619 = vpack.c.bf16 %v1566, %v1566
        %v1620 = vpack.c.bf16 %v1612, %v1612
        %v1621 = vld [vmem:[%s6] sm:$0xf]
        %v1622 = vld [vmem:[%s6 + $0x4] sm:$0xf]
        %v1623 = vld [vmem:[%s6 + $0x8] sm:$0xf]
        %v1624 = vld [vmem:[%s6 + $0xc] sm:$0xf]
        %v1626 = vsel %vm1184, %v1617, 0
        %v1629 = vsel %vm1435, %v1621, 0
        %1631 = vmatprep.subr.bf16.mxu0 0
        %1632 = vmatpush1.bf16.msra.mxu0 0
        %1633 = vmatprep.subr.bf16.mxu0 0
        %1634 = vmatpush1.bf16.msra.mxu0 0
        %1635 = vmatprep.subr.bf16.mxu0 0
        %1636 = vmatpush1.bf16.msra.mxu0 0
        %1637 = vmatprep.subr.bf16.mxu0 0
        %1638 = vmatpush1.bf16.msra.mxu0 0
        %1639 = vmatprep.subr.bf16.mxu0 0
        %1640 = vmatpush1.bf16.msra.mxu0 0
        %1641 = vmatprep.subr.bf16.mxu0 0
        %1642 = vmatpush1.bf16.msra.mxu0 0
        %1643 = vmatprep.subr.bf16.mxu0 0
        %1644 = vmatpush1.bf16.msra.mxu0 0
        %1645 = vmatprep.subr.bf16.mxu0 0
        %1646 = vmatpush1.bf16.msra.mxu0 %v1629
        %1647 = vmatprep.subr.bf16.mxu0 0
        %1648 = vmatpush2.bf16.msra.mxu0 0
        %1649 = vmatprep.subr.bf16.mxu0 0
        %1650 = vmatpush2.bf16.msra.mxu0 0
        %1651 = vmatprep.subr.bf16.mxu0 0
        %1652 = vmatpush2.bf16.msra.mxu0 0
        %1653 = vmatprep.subr.bf16.mxu0 0
        %1654 = vmatpush2.bf16.msra.mxu0 0
        %1655 = vmatprep.subr.bf16.mxu0 0
        %1656 = vmatpush2.bf16.msra.mxu0 0
        %1657 = vmatprep.subr.bf16.mxu0 0
        %1658 = vmatpush2.bf16.msra.mxu0 0
        %1659 = vmatprep.subr.bf16.mxu0 0
        %1660 = vmatpush2.bf16.msra.mxu0 0
        %1661 = vmatprep.subr.bf16.mxu0 0
        %1662 = vmatpush2.bf16.msra.mxu0 0
        %1663 = vmatprep.mubr.bf16.mxu0 0
        %1664 = vmatmul.mubr.bf16.gmra.mxu0 %v1626
        %v1665 = vpop.f32.mrf.mxu0
        %v1666 = vadd.f32 0.0, %v1665
        %v1667 = vpop.f32.mrf.mxu0
        %v1668 = vpop.f32.mrf.mxu0
        %v1669 = vpop.f32.mrf.mxu0
        %1670 = vdwg.mxu0
        %v1672 = vsel %vm1184, %v1618, 0
        %v1675 = vsel %vm1435, %v1622, 0
        %1677 = vmatprep.subr.bf16.mxu0 0
        %1678 = vmatpush1.bf16.msra.mxu0 0
        %1679 = vmatprep.subr.bf16.mxu0 0
        %1680 = vmatpush1.bf16.msra.mxu0 0
        %1681 = vmatprep.subr.bf16.mxu0 0
        %1682 = vmatpush1.bf16.msra.mxu0 0
        %1683 = vmatprep.subr.bf16.mxu0 0
        %1684 = vmatpush1.bf16.msra.mxu0 0
        %1685 = vmatprep.subr.bf16.mxu0 0
        %1686 = vmatpush1.bf16.msra.mxu0 0
        %1687 = vmatprep.subr.bf16.mxu0 0
        %1688 = vmatpush1.bf16.msra.mxu0 0
        %1689 = vmatprep.subr.bf16.mxu0 0
        %1690 = vmatpush1.bf16.msra.mxu0 0
        %1691 = vmatprep.subr.bf16.mxu0 0
        %1692 = vmatpush1.bf16.msra.mxu0 %v1675
        %1693 = vmatprep.subr.bf16.mxu0 0
        %1694 = vmatpush2.bf16.msra.mxu0 0
        %1695 = vmatprep.subr.bf16.mxu0 0
        %1696 = vmatpush2.bf16.msra.mxu0 0
        %1697 = vmatprep.subr.bf16.mxu0 0
        %1698 = vmatpush2.bf16.msra.mxu0 0
        %1699 = vmatprep.subr.bf16.mxu0 0
        %1700 = vmatpush2.bf16.msra.mxu0 0
        %1701 = vmatprep.subr.bf16.mxu0 0
        %1702 = vmatpush2.bf16.msra.mxu0 0
        %1703 = vmatprep.subr.bf16.mxu0 0
        %1704 = vmatpush2.bf16.msra.mxu0 0
        %1705 = vmatprep.subr.bf16.mxu0 0
        %1706 = vmatpush2.bf16.msra.mxu0 0
        %1707 = vmatprep.subr.bf16.mxu0 0
        %1708 = vmatpush2.bf16.msra.mxu0 0
        %1709 = vmatprep.mubr.bf16.mxu0 0
        %1710 = vmatmul.mubr.bf16.gmra.mxu0 %v1672
        %v1711 = vpop.f32.mrf.mxu0
        %v1712 = vadd.f32 0.0, %v1711
        %v1713 = vpop.f32.mrf.mxu0
        %v1714 = vpop.f32.mrf.mxu0
        %v1715 = vpop.f32.mrf.mxu0
        %1716 = vdwg.mxu0
        %v1718 = vsel %vm1184, %v1619, 0
        %v1721 = vsel %vm1435, %v1623, 0
        %1723 = vmatprep.subr.bf16.mxu0 0
        %1724 = vmatpush1.bf16.msra.mxu0 0
        %1725 = vmatprep.subr.bf16.mxu0 0
        %1726 = vmatpush1.bf16.msra.mxu0 0
        %1727 = vmatprep.subr.bf16.mxu0 0
        %1728 = vmatpush1.bf16.msra.mxu0 0
        %1729 = vmatprep.subr.bf16.mxu0 0
        %1730 = vmatpush1.bf16.msra.mxu0 0
        %1731 = vmatprep.subr.bf16.mxu0 0
        %1732 = vmatpush1.bf16.msra.mxu0 0
        %1733 = vmatprep.subr.bf16.mxu0 0
        %1734 = vmatpush1.bf16.msra.mxu0 0
        %1735 = vmatprep.subr.bf16.mxu0 0
        %1736 = vmatpush1.bf16.msra.mxu0 0
        %1737 = vmatprep.subr.bf16.mxu0 0
        %1738 = vmatpush1.bf16.msra.mxu0 %v1721
        %1739 = vmatprep.subr.bf16.mxu0 0
        %1740 = vmatpush2.bf16.msra.mxu0 0
        %1741 = vmatprep.subr.bf16.mxu0 0
        %1742 = vmatpush2.bf16.msra.mxu0 0
        %1743 = vmatprep.subr.bf16.mxu0 0
        %1744 = vmatpush2.bf16.msra.mxu0 0
        %1745 = vmatprep.subr.bf16.mxu0 0
        %1746 = vmatpush2.bf16.msra.mxu0 0
        %1747 = vmatprep.subr.bf16.mxu0 0
        %1748 = vmatpush2.bf16.msra.mxu0 0
        %1749 = vmatprep.subr.bf16.mxu0 0
        %1750 = vmatpush2.bf16.msra.mxu0 0
        %1751 = vmatprep.subr.bf16.mxu0 0
        %1752 = vmatpush2.bf16.msra.mxu0 0
        %1753 = vmatprep.subr.bf16.mxu0 0
        %1754 = vmatpush2.bf16.msra.mxu0 0
        %1755 = vmatprep.mubr.bf16.mxu0 0
        %1756 = vmatmul.mubr.bf16.gmra.mxu0 %v1718
        %v1757 = vpop.f32.mrf.mxu0
        %v1758 = vadd.f32 0.0, %v1757
        %v1759 = vpop.f32.mrf.mxu0
        %v1760 = vpop.f32.mrf.mxu0
        %v1761 = vpop.f32.mrf.mxu0
        %1762 = vdwg.mxu0
        %v1764 = vsel %vm1184, %v1620, 0
        %v1767 = vsel %vm1435, %v1624, 0
        %1769 = vmatprep.subr.bf16.mxu0 0
        %1770 = vmatpush1.bf16.msra.mxu0 0
        %1771 = vmatprep.subr.bf16.mxu0 0
        %1772 = vmatpush1.bf16.msra.mxu0 0
        %1773 = vmatprep.subr.bf16.mxu0 0
        %1774 = vmatpush1.bf16.msra.mxu0 0
        %1775 = vmatprep.subr.bf16.mxu0 0
        %1776 = vmatpush1.bf16.msra.mxu0 0
        %1777 = vmatprep.subr.bf16.mxu0 0
        %1778 = vmatpush1.bf16.msra.mxu0 0
        %1779 = vmatprep.subr.bf16.mxu0 0
        %1780 = vmatpush1.bf16.msra.mxu0 0
        %1781 = vmatprep.subr.bf16.mxu0 0
        %1782 = vmatpush1.bf16.msra.mxu0 0
        %1783 = vmatprep.subr.bf16.mxu0 0
        %1784 = vmatpush1.bf16.msra.mxu0 %v1767
        %1785 = vmatprep.subr.bf16.mxu0 0
        %1786 = vmatpush2.bf16.msra.mxu0 0
        %1787 = vmatprep.subr.bf16.mxu0 0
        %1788 = vmatpush2.bf16.msra.mxu0 0
        %1789 = vmatprep.subr.bf16.mxu0 0
        %1790 = vmatpush2.bf16.msra.mxu0 0
        %1791 = vmatprep.subr.bf16.mxu0 0
        %1792 = vmatpush2.bf16.msra.mxu0 0
        %1793 = vmatprep.subr.bf16.mxu0 0
        %1794 = vmatpush2.bf16.msra.mxu0 0
        %1795 = vmatprep.subr.bf16.mxu0 0
        %1796 = vmatpush2.bf16.msra.mxu0 0
        %1797 = vmatprep.subr.bf16.mxu0 0
        %1798 = vmatpush2.bf16.msra.mxu0 0
        %1799 = vmatprep.subr.bf16.mxu0 0
        %1800 = vmatpush2.bf16.msra.mxu0 0
        %1801 = vmatprep.mubr.bf16.mxu0 0
        %1802 = vmatmul.mubr.bf16.gmra.mxu0 %v1764
        %v1803 = vpop.f32.mrf.mxu0
        %v1804 = vadd.f32 0.0, %v1803
        %v1805 = vpop.f32.mrf.mxu0
        %v1806 = vpop.f32.mrf.mxu0
        %v1807 = vpop.f32.mrf.mxu0
        %1808 = vdwg.mxu0
        %v1809 = vsel %vm465, %v1666, 0.0
        %v1810 = vsel %vm465, %v1712, 0.0
        %v1811 = vadd.f32 %v1809, %v1810
        %v1812 = vsel %vm465, %v1758, 0.0
        %v1813 = vadd.f32 %v1811, %v1812
        %v1814 = vsel %vm465, %v1804, 0.0
        %v1815 = vadd.f32 %v1813, %v1814
        %v1816 = vld [vmem:[%s7] sm:$0x1]
        %v1818 = vlaneseq
        %v1819 = vshrl.u32 %v1818, 7
        %v1820 = vsub.s32 0, %v1819
        %v1821 = vrot.slane %v1816, %v1820
        %v1823 = vadd.f32 %v1815, %v1821
        %v1824 = vadd.f32 %v464, %v1823
        %v1825 = vsel %vm465, %v1824, 0.0
        %1826 = vadd.xlane.f32.xlu0 %v1825
        %v1827 = vpop.xlane.xlu0 %1826
        %v1828 = vmul.f32 %v1827, %v469
        %v1829 = vsub.f32 %v1824, %v1828
        %v1830 = vmul.f32 %v1829, %v1829
        %v1831 = vsel %vm465, %v1830, 0.0
        %1832 = vadd.xlane.f32.xlu0 %v1831
        %v1833 = vpop.xlane.xlu0 %1832
        %v1834 = vmul.f32 %v1833, %v469
        %v1835 = vadd.f32 %v1834, 1e-05
        %v1836 = vrsqrt.pop %v1835
        %v1837 = vmul.f32 %v1829, %v1836
        %v1838 = vld [vmem:[%s8] sm:$0x1]
        %v1840 = vlaneseq
        %v1841 = vshrl.u32 %v1840, 7
        %v1842 = vsub.s32 0, %v1841
        %v1843 = vrot.slane %v1838, %v1842
        %v1845 = vmul.f32 %v1837, %v1843
        %v1846 = vld [vmem:[%s9] sm:$0x1]
        %v1848 = vlaneseq
        %v1849 = vshrl.u32 %v1848, 7
        %v1850 = vsub.s32 0, %v1849
        %v1851 = vrot.slane %v1846, %v1850
        %v1853 = vadd.f32 %v1845, %v1851
        %v1854 = vpack.c.bf16 %v1853, %v1853
        %v1855 = vld [vmem:[%s10] sm:$0xf]
        %v1856 = vld [vmem:[%s10 + $0x4] sm:$0xf]
        %v1857 = vld [vmem:[%s10 + $0x8] sm:$0xf]
        %v1858 = vld [vmem:[%s10 + $0xc] sm:$0xf]
        %v1859 = vld [vmem:[%s11] sm:$0x1]
        %v1861 = vlaneseq
        %v1862 = vshrl.u32 %v1861, 7
        %v1863 = vsub.s32 0, %v1862
        %v1864 = vrot.slane %v1859, %v1863
        %v1870 = vunpack.c.l.b16 %v1855
        %v1871 = vunpack.c.l.b16 %v1856
        %v1872 = vunpack.c.l.b16 %v1857
        %v1873 = vunpack.c.l.b16 %v1858
        %v1874 = vpack.c.b16 %v1871, %v1870
        %v1875 = vpack.c.b16 %v1873, %v1872
        %v1879 = vsel %vm465, %v1854, 0
        %1881 = vmatprep.subr.bf16.mxu0 0
        %1882 = vmatpush1.bf16.msra.mxu0 0
        %1883 = vmatprep.subr.bf16.mxu0 0
        %1884 = vmatpush1.bf16.msra.mxu0 0
        %1885 = vmatprep.subr.bf16.mxu0 0
        %1886 = vmatpush1.bf16.msra.mxu0 0
        %1887 = vmatprep.subr.bf16.mxu0 0
        %1888 = vmatpush1.bf16.msra.mxu0 0
        %1889 = vmatprep.subr.bf16.mxu0 0
        %1890 = vmatpush1.bf16.msra.mxu0 0
        %1891 = vmatprep.subr.bf16.mxu0 0
        %1892 = vmatpush1.bf16.msra.mxu0 0
        %1893 = vmatprep.subr.bf16.mxu0 0
        %1894 = vmatpush1.bf16.msra.mxu0 %v1875
        %1895 = vmatprep.subr.bf16.mxu0 0
        %1896 = vmatpush1.bf16.msra.mxu0 %v1874
        %1897 = vmatprep.subr.bf16.mxu0 0
        %1898 = vmatpush2.bf16.msra.mxu0 0
        %1899 = vmatprep.subr.bf16.mxu0 0
        %1900 = vmatpush2.bf16.msra.mxu0 0
        %1901 = vmatprep.subr.bf16.mxu0 0
        %1902 = vmatpush2.bf16.msra.mxu0 0
        %1903 = vmatprep.subr.bf16.mxu0 0
        %1904 = vmatpush2.bf16.msra.mxu0 0
        %1905 = vmatprep.subr.bf16.mxu0 0
        %1906 = vmatpush2.bf16.msra.mxu0 0
        %1907 = vmatprep.subr.bf16.mxu0 0
        %1908 = vmatpush2.bf16.msra.mxu0 0
        %1909 = vmatprep.subr.bf16.mxu0 0
        %1910 = vmatpush2.bf16.msra.mxu0 0
        %1911 = vmatprep.subr.bf16.mxu0 0
        %1912 = vmatpush2.bf16.msra.mxu0 0
        %1913 = vmatprep.mubr.bf16.mxu0 0
        %1914 = vmatmul.mubr.bf16.gmra.mxu0 %v1879
        %v1915 = vpop.f32.mrf.mxu0
        %v1916 = vadd.f32 %v1864, %v1915
        %v1917 = vpop.f32.mrf.mxu0
        %v1918 = vpop.f32.mrf.mxu0
        %v1919 = vpop.f32.mrf.mxu0
        %1920 = vdwg.mxu0
        %v1921 = vmax.f32 %v1916, 0.0
        %v1922 = vpack.c.bf16 %v1921, %v1921
        %v1923 = vld [vmem:[%s12] sm:$0xf]
        %v1924 = vld [vmem:[%s12 + $0x4] sm:$0xf]
        %v1925 = vld [vmem:[%s12 + $0x8] sm:$0xf]
        %v1926 = vld [vmem:[%s12 + $0xc] sm:$0xf]
        %v1927 = vld [vmem:[%s12 + $0x10] sm:$0xf]
        %v1928 = vld [vmem:[%s12 + $0x14] sm:$0xf]
        %v1929 = vld [vmem:[%s12 + $0x18] sm:$0xf]
        %v1930 = vld [vmem:[%s12 + $0x1c] sm:$0xf]
        %v1931 = vld [vmem:[%s12 + $0x20] sm:$0xf]
        %v1932 = vld [vmem:[%s12 + $0x24] sm:$0xf]
        %v1933 = vld [vmem:[%s12 + $0x28] sm:$0xf]
        %v1934 = vld [vmem:[%s12 + $0x2c] sm:$0xf]
        %v1935 = vld [vmem:[%s12 + $0x30] sm:$0xf]
        %v1936 = vld [vmem:[%s12 + $0x34] sm:$0xf]
        %v1937 = vld [vmem:[%s12 + $0x38] sm:$0xf]
        %v1938 = vld [vmem:[%s12 + $0x3c] sm:$0xf]
        %v1939 = vld [vmem:[%s13] sm:$0x1]
        %v1941 = vlaneseq
        %v1942 = vshrl.u32 %v1941, 7
        %v1943 = vsub.s32 0, %v1942
        %v1944 = vrot.slane %v1939, %v1943
        %v1962 = vunpack.c.l.b16 %v1923
        %v1963 = vunpack.c.l.b16 %v1924
        %v1964 = vunpack.c.l.b16 %v1925
        %v1965 = vunpack.c.l.b16 %v1926
        %v1966 = vunpack.c.l.b16 %v1927
        %v1967 = vunpack.c.l.b16 %v1928
        %v1968 = vunpack.c.l.b16 %v1929
        %v1969 = vunpack.c.l.b16 %v1930
        %v1970 = vunpack.c.l.b16 %v1931
        %v1971 = vunpack.c.l.b16 %v1932
        %v1972 = vunpack.c.l.b16 %v1933
        %v1973 = vunpack.c.l.b16 %v1934
        %v1974 = vunpack.c.l.b16 %v1935
        %v1975 = vunpack.c.l.b16 %v1936
        %v1976 = vunpack.c.l.b16 %v1937
        %v1977 = vunpack.c.l.b16 %v1938
        %v1978 = vpack.c.b16 %v1963, %v1962
        %v1979 = vpack.c.b16 %v1965, %v1964
        %v1980 = vpack.c.b16 %v1967, %v1966
        %v1981 = vpack.c.b16 %v1969, %v1968
        %v1982 = vpack.c.b16 %v1971, %v1970
        %v1983 = vpack.c.b16 %v1973, %v1972
        %v1984 = vpack.c.b16 %v1975, %v1974
        %v1985 = vpack.c.b16 %v1977, %v1976
        %1994 = vmatprep.subr.bf16.mxu0 0
        %1995 = vmatpush1.bf16.msra.mxu0 %v1985
        %1996 = vmatprep.subr.bf16.mxu0 0
        %1997 = vmatpush1.bf16.msra.mxu0 %v1984
        %1998 = vmatprep.subr.bf16.mxu0 0
        %1999 = vmatpush1.bf16.msra.mxu0 %v1983
        %2000 = vmatprep.subr.bf16.mxu0 0
        %2001 = vmatpush1.bf16.msra.mxu0 %v1982
        %2002 = vmatprep.subr.bf16.mxu0 0
        %2003 = vmatpush1.bf16.msra.mxu0 %v1981
        %2004 = vmatprep.subr.bf16.mxu0 0
        %2005 = vmatpush1.bf16.msra.mxu0 %v1980
        %2006 = vmatprep.subr.bf16.mxu0 0
        %2007 = vmatpush1.bf16.msra.mxu0 %v1979
        %2008 = vmatprep.subr.bf16.mxu0 0
        %2009 = vmatpush1.bf16.msra.mxu0 %v1978
        %2010 = vmatprep.subr.bf16.mxu0 0
        %2011 = vmatpush2.bf16.msra.mxu0 0
        %2012 = vmatprep.subr.bf16.mxu0 0
        %2013 = vmatpush2.bf16.msra.mxu0 0
        %2014 = vmatprep.subr.bf16.mxu0 0
        %2015 = vmatpush2.bf16.msra.mxu0 0
        %2016 = vmatprep.subr.bf16.mxu0 0
        %2017 = vmatpush2.bf16.msra.mxu0 0
        %2018 = vmatprep.subr.bf16.mxu0 0
        %2019 = vmatpush2.bf16.msra.mxu0 0
        %2020 = vmatprep.subr.bf16.mxu0 0
        %2021 = vmatpush2.bf16.msra.mxu0 0
        %2022 = vmatprep.subr.bf16.mxu0 0
        %2023 = vmatpush2.bf16.msra.mxu0 0
        %2024 = vmatprep.subr.bf16.mxu0 0
        %2025 = vmatpush2.bf16.msra.mxu0 0
        %2026 = vmatprep.mubr.bf16.mxu0 0
        %2027 = vmatmul.mubr.bf16.gmra.mxu0 %v1922
        %v2028 = vpop.f32.mrf.mxu0
        %v2029 = vadd.f32 %v1944, %v2028
        %v2030 = vpop.f32.mrf.mxu0
        %v2031 = vpop.f32.mrf.mxu0
        %v2032 = vpop.f32.mrf.mxu0
        %2033 = vdwg.mxu0
        %v2034 = vadd.f32 %v1824, %v2029
        %2035 = vst.msk [vmem:[%s458] sm:$0xff] %vm465, %v2034
        %s2036 = sand.u32 %s335, 1
        %s2037 = scalar_lea.sflag [#allocation3], %s2036
        %s2038 = sand.u32 %s335, 1
        %s2039 = smul.addr %s2038, 8
        %s2040 = scalar_lea.vmem [#allocation2], %s2039
        // Predicated region
        $region77: #{tpu_custom_call.1} parent=75 // pred_check
          %p2041 = pneg %p345
        $region78: #{tpu_custom_call.1} parent=75 // pred_check_branch
          %2043 = sbr.rel (%p2041) target = $region80
        $region79: #{tpu_custom_call.1} parent=75 // pred_region
          %s2045 = ssub.s32 128, 128
          %2046 = vsyncadd %s2037, %s2045
          %s2047 = smul.addr %s28, 128
          %s2048 = scalar_lea.hbm %s14, %s2047
          %s2050 = sshll.u32 %s2040, 4
          %s2051 = int_to_ptr.vmem [resolvable:$true] %s2050
          %2053 = dma.vmem_to_hbm [thread:$0]  %s2051, 128, %s2048, %s2037
        $region80: #{tpu_custom_call.1} parent=75 // pred_fallthru
          _
      $region76: #{tpu_custom_call.1} parent=5 // pred_fallthru
        _
      %p2054 = scmp.le.s32.totalorder 2, %s23
      // Predicated region
      $region81: #{tpu_custom_call.1} parent=5 // pred_check
        %p2055 = pneg %p2054
      $region82: #{tpu_custom_call.1} parent=5 // pred_check_branch
        %2057 = sbr.rel (%p2055) target = $region84
      $region83: #{tpu_custom_call.1} parent=5 // pred_region
        %s2058 = ssub.s32 %s23, 2
        // Predicated region
        $region85: #{tpu_custom_call.1} parent=83 // pred_check
          %p2059 = pneg %p351
        $region86: #{tpu_custom_call.1} parent=83 // pred_check_branch
          %2061 = sbr.rel (%p2059) target = $region88
        $region87: #{tpu_custom_call.1} parent=83 // pred_region
          %s2062 = sand.u32 %s336, 1
          %s2063 = scalar_lea.sflag [#allocation3], %s2062
          %s2064 = sand.u32 %s336, 1
          %s2065 = smul.addr %s2064, 8
          %s2066 = scalar_lea.vmem [#allocation2], %s2065
          %2067 = dma.done %s2063, 128
        $region88: #{tpu_custom_call.1} parent=83 // pred_fallthru
          _
      $region84: #{tpu_custom_call.1} parent=5 // pred_fallthru
        _
    $region6: #{tpu_custom_call.1} parent=1 // loop_footer
      %s27 = sadd.s32 1, %s23
    $region7: #{tpu_custom_call.1} parent=1 // loop_footer_branch
      %22 = sbr.rel target = $region3
    $region8: #{tpu_custom_call.1} parent=1 // loop_exit
      _
    %2068 = vsyncpa [#allocation3], 1
    %s2069 = scalar_lea.sflag [#allocation3], 1
    %2070 = vsyncpa %s2069, 1

</llo_original>
